<compile_context>
chip_gen: v7x
topology: tpu7x:2x2x1
jax: 0.10.0
libtpu: 0.0.40
codegen_flags: <defaults>
</compile_context>

<pallas_src>
import math

import jax
import jax.numpy as jnp
from jax.experimental import pallas as pl
from jax.experimental.pallas import tpu as pltpu


def make_flow_chain_kernel(T, C, half, hidden, num_layers, K, dilation_rate):
    """One grid step == one flow applied to one batch row's [T, C] activation."""
    cdt = jnp.bfloat16

    def kernel(x_ref, m_ref, flip_ref,
               pw_ref, pb_ref, iw_ref, ib_ref, rw_ref, rb_ref, qw_ref, qb_ref,
               o_ref):
        # Flow axis is the inner ("arbitrary") grid axis; the output block is the
        # carried state across flows for this batch row.
        @pl.when(pl.program_id(1) == 0)
        def _():
            o_ref[...] = x_ref[...]

        x = o_ref[0]                     # [T, C] f32 (carried state)
        mask = m_ref[0]                  # [T, 1]

        x0 = x[:, :half]                 # passes through the coupling
        x1 = x[:, half:]

        # pre: Conv1d(half, hidden, 1) == channel matmul, then mask.
        h = (jnp.dot(x0.astype(cdt), pw_ref[0],
                     preferred_element_type=jnp.float32) + pb_ref[0]) * mask

        # WN stack. dropout_p = 0 -> dropout is identity.
        skip = jnp.zeros((T, hidden), jnp.float32)
        for i in range(num_layers):
            d = dilation_rate ** i
            p = (K * d - d) // 2
            if p > 0:
                zpad = jnp.zeros((p, hidden), jnp.float32)
                hp = jnp.concatenate([zpad, h, zpad], axis=0)     # [T + 2p, hidden]
            else:
                hp = h
            # Fused K-tap dilated conv: gather the K shifted views once, then one
            # [T, K*hidden] x [K*hidden, 2*hidden] MXU matmul.
            taps = jnp.concatenate([hp[k * d:k * d + T, :] for k in range(K)],
                                   axis=1)                        # [T, K*hidden]
            x_in = jnp.dot(taps.astype(cdt), iw_ref[0, i],
                           preferred_element_type=jnp.float32) + ib_ref[0, i]
            # TODO(synk): conditioning (cond_channels > 0, g != None) would add the
            # per-batch cond_layer slice to x_in here; default module has g=None.
            t_act = jnp.tanh(x_in[:, :hidden])
            s_act = 1.0 / (1.0 + jnp.exp(-x_in[:, hidden:]))
            acts = t_act * s_act                                  # [T, hidden] f32

            rs = jnp.dot(acts.astype(cdt), rw_ref[0, i],
                         preferred_element_type=jnp.float32) + rb_ref[0, i]
            # Last layer's residual half is stored as zeros, so this is uniform.
            h = (h + rs[:, :hidden]) * mask
            skip = skip + rs[:, hidden:]

        hout = skip * mask
        # post: Conv1d(hidden, half, 1); mean_only=True -> m = stats, log_scale = 0.
        m_stats = (jnp.dot(hout.astype(cdt), qw_ref[0],
                           preferred_element_type=jnp.float32) + qb_ref[0]) * mask
        x1n = m_stats + x1 * mask        # x1 * exp(0) * mask + m
        xn = jnp.concatenate([x0, x1n], axis=1)                   # [T, C]

        # torch.flip(x, [1]) == reverse channel lanes: exact f32 permutation matmul.
        o_ref[0] = jnp.dot(xn, flip_ref[...], preferred_element_type=jnp.float32)

    return kernel


def residual_coupling_blocks_forward(x_bct, x_mask_b1t, params, *,
                                     kernel_size, dilation_rate):
    """x_bct: [B, C, T], x_mask_b1t: [B, 1, T]. Returns x: [B, C, T] (reverse=False).
    TODO(synk): reverse=True (inference direction) path not implemented here."""
    B, C, T = x_bct.shape
    half = C // 2
    num_flows, _, hidden = params["pre_w"].shape
    L = params["in_w"].shape[1]
    K = kernel_size
    for i in range(L):
        assert ((K - 1) * (dilation_rate ** i)) % 2 == 0, "same-padding requires even (K-1)*d"

    x = jnp.transpose(x_bct, (0, 2, 1)).astype(jnp.float32)          # [B, T, C]
    mask = jnp.transpose(x_mask_b1t, (0, 2, 1)).astype(jnp.float32)  # [B, T, 1]
    flip = jnp.flip(jnp.eye(C, dtype=jnp.float32), axis=0)           # x @ flip reverses channels

    # bf16 weights (halved DMA bytes / MXU-friendly); biases stay f32.
    wdt = jnp.bfloat16
    pre_w = params["pre_w"].astype(wdt)
    in_w = params["in_w"].astype(wdt)
    rs_w = params["rs_w"].astype(wdt)
    post_w = params["post_w"].astype(wdt)
    pre_b, in_b = params["pre_b"], params["in_b"]
    rs_b, post_b = params["rs_b"], params["post_b"]

    kernel = make_flow_chain_kernel(T, C, half, hidden, L, K, dilation_rate)

    in_specs = [
        pl.BlockSpec((1, T, C), lambda b, f: (b, 0, 0)),                       # x
        pl.BlockSpec((1, T, 1), lambda b, f: (b, 0, 0)),                       # mask
        pl.BlockSpec((C, C), lambda b, f: (0, 0)),                             # flip
        pl.BlockSpec((1, half, hidden), lambda b, f: (f, 0, 0)),               # pre_w
        pl.BlockSpec((1, 1, hidden), lambda b, f: (f, 0, 0)),                  # pre_b
        pl.BlockSpec((1, L, K * hidden, 2 * hidden), lambda b, f: (f, 0, 0, 0)),  # in_w
        pl.BlockSpec((1, L, 1, 2 * hidden), lambda b, f: (f, 0, 0, 0)),        # in_b
        pl.BlockSpec((1, L, hidden, 2 * hidden), lambda b, f: (f, 0, 0, 0)),   # rs_w
        pl.BlockSpec((1, L, 1, 2 * hidden), lambda b, f: (f, 0, 0, 0)),        # rs_b
        pl.BlockSpec((1, hidden, half), lambda b, f: (f, 0, 0)),               # post_w
        pl.BlockSpec((1, 1, half), lambda b, f: (f, 0, 0)),                    # post_b
    ]
    out_spec = pl.BlockSpec((1, T, C), lambda b, f: (b, 0, 0))

    y = pl.pallas_call(
        kernel,
        out_shape=jax.ShapeDtypeStruct((B, T, C), jnp.float32),
        grid=(B, num_flows),
        in_specs=in_specs,
        out_specs=out_spec,
        compiler_params=pltpu.CompilerParams(
            dimension_semantics=("parallel", "arbitrary")),
    )(x, mask, flip, pre_w, pre_b, in_w, in_b, rs_w, rs_b, post_w, post_b)

    return jnp.transpose(y, (0, 2, 1))                                # [B, C, T]


def init_params(key, channels, hidden, K, dilation_rate, num_layers, num_flows):
    half = channels // 2
    L, F = num_layers, num_flows
    ks = jax.random.split(key, 4)

    def nrm(k, shape, std):
        return jax.random.normal(k, shape, jnp.float32) * std

    pre_w = nrm(ks[0], (F, half, hidden), 1.0 / math.sqrt(half))
    pre_b = jnp.zeros((F, 1, hidden), jnp.float32)
    # dilated conv weights, per flow / layer, taps stacked along rows:
    # in_w[f, i, k*hidden + cin, cout] == torch conv weight[cout, cin, k]
    in_w = nrm(ks[1], (F, L, K * hidden, 2 * hidden), 1.0 / math.sqrt(K * hidden))
    in_b = jnp.zeros((F, L, 1, 2 * hidden), jnp.float32)
    rs_w = nrm(ks[2], (F, L, hidden, 2 * hidden), 1.0 / math.sqrt(hidden))
    # Last WN layer's res_skip conv only produces the skip half -> zero the residual half.
    rs_w = rs_w.at[:, L - 1, :, :hidden].set(0.0)
    rs_b = jnp.zeros((F, L, 1, 2 * hidden), jnp.float32)
    # NOTE: the PyTorch module zero-inits `post`; small random weights are used here
    # so the coupling path is exercised numerically (semantics are identical).
    post_w = nrm(ks[3], (F, hidden, half), 0.1 / math.sqrt(hidden))
    post_b = jnp.zeros((F, 1, half), jnp.float32)
    return dict(pre_w=pre_w, pre_b=pre_b, in_w=in_w, in_b=in_b,
                rs_w=rs_w, rs_b=rs_b, post_w=post_w, post_b=post_b)


def reference_forward(x_bct, x_mask_b1t, params, *, kernel_size, dilation_rate):
    """Pure-JAX reference with the same bf16-matmul / f32-accumulate casting."""
    B, C, T = x_bct.shape
    half = C // 2
    num_flows, _, hidden = params["pre_w"].shape
    L = params["in_w"].shape[1]
    K = kernel_size
    cdt = jnp.bfloat16

    def mm(a, w):
        return jnp.dot(a.astype(cdt), w.astype(cdt), preferred_element_type=jnp.float32)

    x = jnp.transpose(x_bct, (0, 2, 1)).astype(jnp.float32)
    mask = jnp.transpose(x_mask_b1t, (0, 2, 1)).astype(jnp.float32)
    for f in range(num_flows):
        x0, x1 = x[..., :half], x[..., half:]
        h = (mm(x0, params["pre_w"][f]) + params["pre_b"][f]) * mask
        skip = jnp.zeros_like(h)
        for i in range(L):
            d = dilation_rate ** i
            p = (K * d - d) // 2
            hp = jnp.pad(h, ((0, 0), (p, p), (0, 0)))
            taps = jnp.concatenate([hp[:, k * d:k * d + T, :] for k in range(K)], axis=-1)
            x_in = mm(taps, params["in_w"][f, i]) + params["in_b"][f, i]
            acts = jnp.tanh(x_in[..., :hidden]) * (1.0 / (1.0 + jnp.exp(-x_in[..., hidden:])))
            rs = mm(acts, params["rs_w"][f, i]) + params["rs_b"][f, i]
            h = (h + rs[..., :hidden]) * mask
            skip = skip + rs[..., hidden:]
        m_stats = (mm(skip * mask, params["post_w"][f]) + params["post_b"][f]) * mask
        x1n = m_stats + x1 * mask
        x = jnp.flip(jnp.concatenate([x0, x1n], axis=-1), axis=-1)
    return jnp.transpose(x, (0, 2, 1))


if __name__ == "__main__":
    B, T = 2, 16
    channels = 8
    hidden_channels = 32
    kernel_size = 5
    dilation_rate = 1
    num_layers = 4
    num_flows = 4

    key = jax.random.PRNGKey(0)
    kx, kp = jax.random.split(key)
    x = jax.random.normal(kx, (B, channels, T), jnp.float32)            # [B, C, T]
    x_lengths = jnp.array([T, 11], jnp.int32)
    x_mask = (jnp.arange(T)[None, :] < x_lengths[:, None]).astype(jnp.float32)[:, None, :]  # [B,1,T]

    params = init_params(kp, channels, hidden_channels, kernel_size,
                         dilation_rate, num_layers, num_flows)

    y = residual_coupling_blocks_forward(x, x_mask, params,
                                         kernel_size=kernel_size,
                                         dilation_rate=dilation_rate)
    y = jax.block_until_ready(y)
    assert y.shape == (B, channels, T)
    assert bool(jnp.all(jnp.isfinite(y)))

    ref = reference_forward(x, x_mask, params,
                            kernel_size=kernel_size, dilation_rate=dilation_rate)
    err = float(jnp.max(jnp.abs(y - ref)))
    assert err < 5e-2, f"max abs err {err}"
    print("KERNEL_OK")
</pallas_src>

<mosaic_0001>
module attributes {stable_mosaic.version = 11 : i64} {
  func.func @kernel(%arg0: i32, %arg1: i32, %arg2: memref<1x16x8xf32, #tpu.memory_space<vmem>>, %arg3: memref<1x16x1xf32, #tpu.memory_space<vmem>>, %arg4: memref<8x8xf32, #tpu.memory_space<vmem>>, %arg5: memref<1x4x32xbf16, #tpu.memory_space<vmem>>, %arg6: memref<1x1x32xf32, #tpu.memory_space<vmem>>, %arg7: memref<1x4x160x64xbf16, #tpu.memory_space<vmem>>, %arg8: memref<1x4x1x64xf32, #tpu.memory_space<vmem>>, %arg9: memref<1x4x32x64xbf16, #tpu.memory_space<vmem>>, %arg10: memref<1x4x1x64xf32, #tpu.memory_space<vmem>>, %arg11: memref<1x32x4xbf16, #tpu.memory_space<vmem>>, %arg12: memref<1x1x4xf32, #tpu.memory_space<vmem>>, %arg13: memref<1x16x8xf32, #tpu.memory_space<vmem>>) attributes {dimension_semantics = [#tpu.dimension_semantics<parallel>, #tpu.dimension_semantics<arbitrary>], iteration_bounds = array<i64: 2, 4>, scalar_prefetch = 0 : i64, scratch_operands = 0 : i64, tpu.core_type = #tpu.core_type<tc>, window_params = [{transform_indices = @transform_0, window_bounds = array<i64: 1, 16, 8>}, {transform_indices = @transform_1, window_bounds = array<i64: 1, 16, 1>}, {pipeline_mode = #tpu.pipeline_mode<synchronous>, transform_indices = @transform_2, window_bounds = array<i64: 8, 8>}, {transform_indices = @transform_3, window_bounds = array<i64: 1, 4, 32>}, {transform_indices = @transform_4, window_bounds = array<i64: 1, 1, 32>}, {transform_indices = @transform_5, window_bounds = array<i64: 1, 4, 160, 64>}, {transform_indices = @transform_6, window_bounds = array<i64: 1, 4, 1, 64>}, {transform_indices = @transform_7, window_bounds = array<i64: 1, 4, 32, 64>}, {transform_indices = @transform_8, window_bounds = array<i64: 1, 4, 1, 64>}, {transform_indices = @transform_9, window_bounds = array<i64: 1, 32, 4>}, {transform_indices = @transform_10, window_bounds = array<i64: 1, 1, 4>}, {transform_indices = @transform_11, window_bounds = array<i64: 1, 16, 8>}]} {
    %c0_i32 = arith.constant 0 : i32
    %0 = arith.cmpi eq, %arg1, %c0_i32 : i32
    %1 = arith.extui %0 : i1 to i32
    %c0_i32_0 = arith.constant 0 : i32
    %2 = arith.cmpi ne, %1, %c0_i32_0 : i32
    scf.if %2 {
      %c0_111 = arith.constant 0 : index
      %c0_112 = arith.constant 0 : index
      %c0_113 = arith.constant 0 : index
      %201 = vector.load %arg2[%c0_111, %c0_112, %c0_113] : memref<1x16x8xf32, #tpu.memory_space<vmem>>, vector<1x16x8xf32>
      %c0_114 = arith.constant 0 : index
      %c0_115 = arith.constant 0 : index
      %c0_116 = arith.constant 0 : index
      %202 = vector.load %arg13[%c0_114, %c0_115, %c0_116] : memref<1x16x8xf32, #tpu.memory_space<vmem>>, vector<1x16x8xf32>
      tpu.vector_store %arg13[%c0_114, %c0_115, %c0_116], %201 {strides = array<i32>} : memref<1x16x8xf32, #tpu.memory_space<vmem>>, vector<1x16x8xf32>,
    } else {
    }
    %c0 = arith.constant 0 : index
    %c0_1 = arith.constant 0 : index
    %c0_2 = arith.constant 0 : index
    %3 = vector.load %arg13[%c0, %c0_1, %c0_2] : memref<1x16x8xf32, #tpu.memory_space<vmem>>, vector<1x16x8xf32>
    %4 = vector.shape_cast %3 : vector<1x16x8xf32> to vector<16x8xf32>
    %c0_3 = arith.constant 0 : index
    %c0_4 = arith.constant 0 : index
    %c0_5 = arith.constant 0 : index
    %5 = vector.load %arg3[%c0_3, %c0_4, %c0_5] : memref<1x16x1xf32, #tpu.memory_space<vmem>>, vector<1x16x1xf32>
    %6 = vector.shape_cast %5 : vector<1x16x1xf32> to vector<16x1xf32>
    %7 = vector.extract_strided_slice %4 {offsets = [0, 0], sizes = [16, 4], strides = [1, 1]} : vector<16x8xf32> to vector<16x4xf32>
    %8 = vector.extract_strided_slice %4 {offsets = [0, 4], sizes = [16, 4], strides = [1, 1]} : vector<16x8xf32> to vector<16x4xf32>
    %9 = arith.truncf %7 : vector<16x4xf32> to vector<16x4xbf16>
    %c0_6 = arith.constant 0 : index
    %c0_7 = arith.constant 0 : index
    %c0_8 = arith.constant 0 : index
    %10 = vector.load %arg5[%c0_6, %c0_7, %c0_8] : memref<1x4x32xbf16, #tpu.memory_space<vmem>>, vector<1x4x32xbf16>
    %11 = vector.shape_cast %10 : vector<1x4x32xbf16> to vector<4x32xbf16>
    %cst = arith.constant dense<0.000000e+00> : vector<16x32xf32>
    %12 = tpu.matmul %9, %11, %cst {dimension_numbers = #tpu.dot_dimension_numbers<[1], [0], [0], [1], [0, 0, 1, 1], [], []>} : vector<16x4xbf16>, vector<4x32xbf16>, vector<16x32xf32> -> vector<16x32xf32>
    %c0_9 = arith.constant 0 : index
    %c0_10 = arith.constant 0 : index
    %c0_11 = arith.constant 0 : index
    %13 = vector.load %arg6[%c0_9, %c0_10, %c0_11] : memref<1x1x32xf32, #tpu.memory_space<vmem>>, vector<1x1x32xf32>
    %14 = vector.shape_cast %13 : vector<1x1x32xf32> to vector<1x32xf32>
    %15 = vector.broadcast %14 : vector<1x32xf32> to vector<16x32xf32>
    %16 = arith.addf %12, %15 : vector<16x32xf32>
    %17 = vector.broadcast %6 : vector<16x1xf32> to vector<16x32xf32>
    %18 = arith.mulf %16, %17 : vector<16x32xf32>
    %cst_12 = arith.constant 0.000000e+00 : f32
    %19 = vector.broadcast %cst_12 : f32 to vector<16x32xf32>
    %cst_13 = arith.constant 0.000000e+00 : f32
    %20 = vector.broadcast %cst_13 : f32 to vector<2x32xf32>
    %21 = tpu.concatenate %20, %18, %20 in 0 : vector<2x32xf32>, vector<16x32xf32>, vector<2x32xf32> -> vector<20x32xf32>
    %22 = vector.extract_strided_slice %21 {offsets = [0, 0], sizes = [16, 32], strides = [1, 1]} : vector<20x32xf32> to vector<16x32xf32>
    %23 = vector.extract_strided_slice %21 {offsets = [1, 0], sizes = [16, 32], strides = [1, 1]} : vector<20x32xf32> to vector<16x32xf32>
    %24 = vector.extract_strided_slice %21 {offsets = [2, 0], sizes = [16, 32], strides = [1, 1]} : vector<20x32xf32> to vector<16x32xf32>
    %25 = vector.extract_strided_slice %21 {offsets = [3, 0], sizes = [16, 32], strides = [1, 1]} : vector<20x32xf32> to vector<16x32xf32>
    %26 = vector.extract_strided_slice %21 {offsets = [4, 0], sizes = [16, 32], strides = [1, 1]} : vector<20x32xf32> to vector<16x32xf32>
    %27 = tpu.concatenate %22, %23, %24, %25, %26 in 1 : vector<16x32xf32>, vector<16x32xf32>, vector<16x32xf32>, vector<16x32xf32>, vector<16x32xf32> -> vector<16x160xf32>
    %28 = arith.truncf %27 : vector<16x160xf32> to vector<16x160xbf16>
    %c0_14 = arith.constant 0 : index
    %c0_15 = arith.constant 0 : index
    %c0_16 = arith.constant 0 : index
    %c0_17 = arith.constant 0 : index
    %29 = vector.load %arg7[%c0_14, %c0_15, %c0_16, %c0_17] : memref<1x4x160x64xbf16, #tpu.memory_space<vmem>>, vector<1x1x160x64xbf16>
    %30 = vector.shape_cast %29 : vector<1x1x160x64xbf16> to vector<160x64xbf16>
    %cst_18 = arith.constant dense<0.000000e+00> : vector<16x64xf32>
    %31 = tpu.matmul %28, %30, %cst_18 {dimension_numbers = #tpu.dot_dimension_numbers<[1], [0], [0], [1], [0, 0, 1, 1], [], []>} : vector<16x160xbf16>, vector<160x64xbf16>, vector<16x64xf32> -> vector<16x64xf32>
    %c0_19 = arith.constant 0 : index
    %c0_20 = arith.constant 0 : index
    %c0_21 = arith.constant 0 : index
    %c0_22 = arith.constant 0 : index
    %32 = vector.load %arg8[%c0_19, %c0_20, %c0_21, %c0_22] : memref<1x4x1x64xf32, #tpu.memory_space<vmem>>, vector<1x1x1x64xf32>
    %33 = vector.shape_cast %32 : vector<1x1x1x64xf32> to vector<1x64xf32>
    %34 = vector.broadcast %33 : vector<1x64xf32> to vector<16x64xf32>
    %35 = arith.addf %31, %34 : vector<16x64xf32>
    %36 = vector.extract_strided_slice %35 {offsets = [0, 0], sizes = [16, 32], strides = [1, 1]} : vector<16x64xf32> to vector<16x32xf32>
    %37 = math.tanh %36 : vector<16x32xf32>
    %38 = vector.extract_strided_slice %35 {offsets = [0, 32], sizes = [16, 32], strides = [1, 1]} : vector<16x64xf32> to vector<16x32xf32>
    %cst_23 = arith.constant 0.000000e+00 : f32
    %39 = vector.broadcast %cst_23 : f32 to vector<16x32xf32>
    %40 = arith.subf %39, %38 : vector<16x32xf32>
    %41 = math.exp %40 : vector<16x32xf32>
    %cst_24 = arith.constant 1.000000e+00 : f32
    %42 = vector.broadcast %cst_24 : f32 to vector<16x32xf32>
    %43 = arith.addf %42, %41 : vector<16x32xf32>
    %cst_25 = arith.constant 1.000000e+00 : f32
    %44 = vector.broadcast %cst_25 : f32 to vector<16x32xf32>
    %45 = arith.divf %44, %43 : vector<16x32xf32>
    %46 = arith.mulf %37, %45 : vector<16x32xf32>
    %47 = arith.truncf %46 : vector<16x32xf32> to vector<16x32xbf16>
    %c0_26 = arith.constant 0 : index
    %c0_27 = arith.constant 0 : index
    %c0_28 = arith.constant 0 : index
    %c0_29 = arith.constant 0 : index
    %48 = vector.load %arg9[%c0_26, %c0_27, %c0_28, %c0_29] : memref<1x4x32x64xbf16, #tpu.memory_space<vmem>>, vector<1x1x32x64xbf16>
    %49 = vector.shape_cast %48 : vector<1x1x32x64xbf16> to vector<32x64xbf16>
    %cst_30 = arith.constant dense<0.000000e+00> : vector<16x64xf32>
    %50 = tpu.matmul %47, %49, %cst_30 {dimension_numbers = #tpu.dot_dimension_numbers<[1], [0], [0], [1], [0, 0, 1, 1], [], []>} : vector<16x32xbf16>, vector<32x64xbf16>, vector<16x64xf32> -> vector<16x64xf32>
    %c0_31 = arith.constant 0 : index
    %c0_32 = arith.constant 0 : index
    %c0_33 = arith.constant 0 : index
    %c0_34 = arith.constant 0 : index
    %51 = vector.load %arg10[%c0_31, %c0_32, %c0_33, %c0_34] : memref<1x4x1x64xf32, #tpu.memory_space<vmem>>, vector<1x1x1x64xf32>
    %52 = vector.shape_cast %51 : vector<1x1x1x64xf32> to vector<1x64xf32>
    %53 = vector.broadcast %52 : vector<1x64xf32> to vector<16x64xf32>
    %54 = arith.addf %50, %53 : vector<16x64xf32>
    %55 = vector.extract_strided_slice %54 {offsets = [0, 0], sizes = [16, 32], strides = [1, 1]} : vector<16x64xf32> to vector<16x32xf32>
    %56 = arith.addf %18, %55 : vector<16x32xf32>
    %57 = vector.broadcast %6 : vector<16x1xf32> to vector<16x32xf32>
    %58 = arith.mulf %56, %57 : vector<16x32xf32>
    %59 = vector.extract_strided_slice %54 {offsets = [0, 32], sizes = [16, 32], strides = [1, 1]} : vector<16x64xf32> to vector<16x32xf32>
    %60 = arith.addf %19, %59 : vector<16x32xf32>
    %cst_35 = arith.constant 0.000000e+00 : f32
    %61 = vector.broadcast %cst_35 : f32 to vector<2x32xf32>
    %62 = tpu.concatenate %61, %58, %61 in 0 : vector<2x32xf32>, vector<16x32xf32>, vector<2x32xf32> -> vector<20x32xf32>
    %63 = vector.extract_strided_slice %62 {offsets = [0, 0], sizes = [16, 32], strides = [1, 1]} : vector<20x32xf32> to vector<16x32xf32>
    %64 = vector.extract_strided_slice %62 {offsets = [1, 0], sizes = [16, 32], strides = [1, 1]} : vector<20x32xf32> to vector<16x32xf32>
    %65 = vector.extract_strided_slice %62 {offsets = [2, 0], sizes = [16, 32], strides = [1, 1]} : vector<20x32xf32> to vector<16x32xf32>
    %66 = vector.extract_strided_slice %62 {offsets = [3, 0], sizes = [16, 32], strides = [1, 1]} : vector<20x32xf32> to vector<16x32xf32>
    %67 = vector.extract_strided_slice %62 {offsets = [4, 0], sizes = [16, 32], strides = [1, 1]} : vector<20x32xf32> to vector<16x32xf32>
    %68 = tpu.concatenate %63, %64, %65, %66, %67 in 1 : vector<16x32xf32>, vector<16x32xf32>, vector<16x32xf32>, vector<16x32xf32>, vector<16x32xf32> -> vector<16x160xf32>
    %69 = arith.truncf %68 : vector<16x160xf32> to vector<16x160xbf16>
    %c0_36 = arith.constant 0 : index
    %c1 = arith.constant 1 : index
    %c0_37 = arith.constant 0 : index
    %c0_38 = arith.constant 0 : index
    %70 = vector.load %arg7[%c0_36, %c1, %c0_37, %c0_38] : memref<1x4x160x64xbf16, #tpu.memory_space<vmem>>, vector<1x1x160x64xbf16>
    %71 = vector.shape_cast %70 : vector<1x1x160x64xbf16> to vector<160x64xbf16>
    %cst_39 = arith.constant dense<0.000000e+00> : vector<16x64xf32>
    %72 = tpu.matmul %69, %71, %cst_39 {dimension_numbers = #tpu.dot_dimension_numbers<[1], [0], [0], [1], [0, 0, 1, 1], [], []>} : vector<16x160xbf16>, vector<160x64xbf16>, vector<16x64xf32> -> vector<16x64xf32>
    %c0_40 = arith.constant 0 : index
    %c1_41 = arith.constant 1 : index
    %c0_42 = arith.constant 0 : index
    %c0_43 = arith.constant 0 : index
    %73 = vector.load %arg8[%c0_40, %c1_41, %c0_42, %c0_43] : memref<1x4x1x64xf32, #tpu.memory_space<vmem>>, vector<1x1x1x64xf32>
    %74 = vector.shape_cast %73 : vector<1x1x1x64xf32> to vector<1x64xf32>
    %75 = vector.broadcast %74 : vector<1x64xf32> to vector<16x64xf32>
    %76 = arith.addf %72, %75 : vector<16x64xf32>
    %77 = vector.extract_strided_slice %76 {offsets = [0, 0], sizes = [16, 32], strides = [1, 1]} : vector<16x64xf32> to vector<16x32xf32>
    %78 = math.tanh %77 : vector<16x32xf32>
    %79 = vector.extract_strided_slice %76 {offsets = [0, 32], sizes = [16, 32], strides = [1, 1]} : vector<16x64xf32> to vector<16x32xf32>
    %cst_44 = arith.constant 0.000000e+00 : f32
    %80 = vector.broadcast %cst_44 : f32 to vector<16x32xf32>
    %81 = arith.subf %80, %79 : vector<16x32xf32>
    %82 = math.exp %81 : vector<16x32xf32>
    %cst_45 = arith.constant 1.000000e+00 : f32
    %83 = vector.broadcast %cst_45 : f32 to vector<16x32xf32>
    %84 = arith.addf %83, %82 : vector<16x32xf32>
    %cst_46 = arith.constant 1.000000e+00 : f32
    %85 = vector.broadcast %cst_46 : f32 to vector<16x32xf32>
    %86 = arith.divf %85, %84 : vector<16x32xf32>
    %87 = arith.mulf %78, %86 : vector<16x32xf32>
    %88 = arith.truncf %87 : vector<16x32xf32> to vector<16x32xbf16>
    %c0_47 = arith.constant 0 : index
    %c1_48 = arith.constant 1 : index
    %c0_49 = arith.constant 0 : index
    %c0_50 = arith.constant 0 : index
    %89 = vector.load %arg9[%c0_47, %c1_48, %c0_49, %c0_50] : memref<1x4x32x64xbf16, #tpu.memory_space<vmem>>, vector<1x1x32x64xbf16>
    %90 = vector.shape_cast %89 : vector<1x1x32x64xbf16> to vector<32x64xbf16>
    %cst_51 = arith.constant dense<0.000000e+00> : vector<16x64xf32>
    %91 = tpu.matmul %88, %90, %cst_51 {dimension_numbers = #tpu.dot_dimension_numbers<[1], [0], [0], [1], [0, 0, 1, 1], [], []>} : vector<16x32xbf16>, vector<32x64xbf16>, vector<16x64xf32> -> vector<16x64xf32>
    %c0_52 = arith.constant 0 : index
    %c1_53 = arith.constant 1 : index
    %c0_54 = arith.constant 0 : index
    %c0_55 = arith.constant 0 : index
    %92 = vector.load %arg10[%c0_52, %c1_53, %c0_54, %c0_55] : memref<1x4x1x64xf32, #tpu.memory_space<vmem>>, vector<1x1x1x64xf32>
    %93 = vector.shape_cast %92 : vector<1x1x1x64xf32> to vector<1x64xf32>
    %94 = vector.broadcast %93 : vector<1x64xf32> to vector<16x64xf32>
    %95 = arith.addf %91, %94 : vector<16x64xf32>
    %96 = vector.extract_strided_slice %95 {offsets = [0, 0], sizes = [16, 32], strides = [1, 1]} : vector<16x64xf32> to vector<16x32xf32>
    %97 = arith.addf %58, %96 : vector<16x32xf32>
    %98 = vector.broadcast %6 : vector<16x1xf32> to vector<16x32xf32>
    %99 = arith.mulf %97, %98 : vector<16x32xf32>
    %100 = vector.extract_strided_slice %95 {offsets = [0, 32], sizes = [16, 32], strides = [1, 1]} : vector<16x64xf32> to vector<16x32xf32>
    %101 = arith.addf %60, %100 : vector<16x32xf32>
    %cst_56 = arith.constant 0.000000e+00 : f32
    %102 = vector.broadcast %cst_56 : f32 to vector<2x32xf32>
    %103 = tpu.concatenate %102, %99, %102 in 0 : vector<2x32xf32>, vector<16x32xf32>, vector<2x32xf32> -> vector<20x32xf32>
    %104 = vector.extract_strided_slice %103 {offsets = [0, 0], sizes = [16, 32], strides = [1, 1]} : vector<20x32xf32> to vector<16x32xf32>
    %105 = vector.extract_strided_slice %103 {offsets = [1, 0], sizes = [16, 32], strides = [1, 1]} : vector<20x32xf32> to vector<16x32xf32>
    %106 = vector.extract_strided_slice %103 {offsets = [2, 0], sizes = [16, 32], strides = [1, 1]} : vector<20x32xf32> to vector<16x32xf32>
    %107 = vector.extract_strided_slice %103 {offsets = [3, 0], sizes = [16, 32], strides = [1, 1]} : vector<20x32xf32> to vector<16x32xf32>
    %108 = vector.extract_strided_slice %103 {offsets = [4, 0], sizes = [16, 32], strides = [1, 1]} : vector<20x32xf32> to vector<16x32xf32>
    %109 = tpu.concatenate %104, %105, %106, %107, %108 in 1 : vector<16x32xf32>, vector<16x32xf32>, vector<16x32xf32>, vector<16x32xf32>, vector<16x32xf32> -> vector<16x160xf32>
    %110 = arith.truncf %109 : vector<16x160xf32> to vector<16x160xbf16>
    %c0_57 = arith.constant 0 : index
    %c2 = arith.constant 2 : index
    %c0_58 = arith.constant 0 : index
    %c0_59 = arith.constant 0 : index
    %111 = vector.load %arg7[%c0_57, %c2, %c0_58, %c0_59] : memref<1x4x160x64xbf16, #tpu.memory_space<vmem>>, vector<1x1x160x64xbf16>
    %112 = vector.shape_cast %111 : vector<1x1x160x64xbf16> to vector<160x64xbf16>
    %cst_60 = arith.constant dense<0.000000e+00> : vector<16x64xf32>
    %113 = tpu.matmul %110, %112, %cst_60 {dimension_numbers = #tpu.dot_dimension_numbers<[1], [0], [0], [1], [0, 0, 1, 1], [], []>} : vector<16x160xbf16>, vector<160x64xbf16>, vector<16x64xf32> -> vector<16x64xf32>
    %c0_61 = arith.constant 0 : index
    %c2_62 = arith.constant 2 : index
    %c0_63 = arith.constant 0 : index
    %c0_64 = arith.constant 0 : index
    %114 = vector.load %arg8[%c0_61, %c2_62, %c0_63, %c0_64] : memref<1x4x1x64xf32, #tpu.memory_space<vmem>>, vector<1x1x1x64xf32>
    %115 = vector.shape_cast %114 : vector<1x1x1x64xf32> to vector<1x64xf32>
    %116 = vector.broadcast %115 : vector<1x64xf32> to vector<16x64xf32>
    %117 = arith.addf %113, %116 : vector<16x64xf32>
    %118 = vector.extract_strided_slice %117 {offsets = [0, 0], sizes = [16, 32], strides = [1, 1]} : vector<16x64xf32> to vector<16x32xf32>
    %119 = math.tanh %118 : vector<16x32xf32>
    %120 = vector.extract_strided_slice %117 {offsets = [0, 32], sizes = [16, 32], strides = [1, 1]} : vector<16x64xf32> to vector<16x32xf32>
    %cst_65 = arith.constant 0.000000e+00 : f32
    %121 = vector.broadcast %cst_65 : f32 to vector<16x32xf32>
    %122 = arith.subf %121, %120 : vector<16x32xf32>
    %123 = math.exp %122 : vector<16x32xf32>
    %cst_66 = arith.constant 1.000000e+00 : f32
    %124 = vector.broadcast %cst_66 : f32 to vector<16x32xf32>
    %125 = arith.addf %124, %123 : vector<16x32xf32>
    %cst_67 = arith.constant 1.000000e+00 : f32
    %126 = vector.broadcast %cst_67 : f32 to vector<16x32xf32>
    %127 = arith.divf %126, %125 : vector<16x32xf32>
    %128 = arith.mulf %119, %127 : vector<16x32xf32>
    %129 = arith.truncf %128 : vector<16x32xf32> to vector<16x32xbf16>
    %c0_68 = arith.constant 0 : index
    %c2_69 = arith.constant 2 : index
    %c0_70 = arith.constant 0 : index
    %c0_71 = arith.constant 0 : index
    %130 = vector.load %arg9[%c0_68, %c2_69, %c0_70, %c0_71] : memref<1x4x32x64xbf16, #tpu.memory_space<vmem>>, vector<1x1x32x64xbf16>
    %131 = vector.shape_cast %130 : vector<1x1x32x64xbf16> to vector<32x64xbf16>
    %cst_72 = arith.constant dense<0.000000e+00> : vector<16x64xf32>
    %132 = tpu.matmul %129, %131, %cst_72 {dimension_numbers = #tpu.dot_dimension_numbers<[1], [0], [0], [1], [0, 0, 1, 1], [], []>} : vector<16x32xbf16>, vector<32x64xbf16>, vector<16x64xf32> -> vector<16x64xf32>
    %c0_73 = arith.constant 0 : index
    %c2_74 = arith.constant 2 : index
    %c0_75 = arith.constant 0 : index
    %c0_76 = arith.constant 0 : index
    %133 = vector.load %arg10[%c0_73, %c2_74, %c0_75, %c0_76] : memref<1x4x1x64xf32, #tpu.memory_space<vmem>>, vector<1x1x1x64xf32>
    %134 = vector.shape_cast %133 : vector<1x1x1x64xf32> to vector<1x64xf32>
    %135 = vector.broadcast %134 : vector<1x64xf32> to vector<16x64xf32>
    %136 = arith.addf %132, %135 : vector<16x64xf32>
    %137 = vector.extract_strided_slice %136 {offsets = [0, 0], sizes = [16, 32], strides = [1, 1]} : vector<16x64xf32> to vector<16x32xf32>
    %138 = arith.addf %99, %137 : vector<16x32xf32>
    %139 = vector.broadcast %6 : vector<16x1xf32> to vector<16x32xf32>
    %140 = arith.mulf %138, %139 : vector<16x32xf32>
    %141 = vector.extract_strided_slice %136 {offsets = [0, 32], sizes = [16, 32], strides = [1, 1]} : vector<16x64xf32> to vector<16x32xf32>
    %142 = arith.addf %101, %141 : vector<16x32xf32>
    %cst_77 = arith.constant 0.000000e+00 : f32
    %143 = vector.broadcast %cst_77 : f32 to vector<2x32xf32>
    %144 = tpu.concatenate %143, %140, %143 in 0 : vector<2x32xf32>, vector<16x32xf32>, vector<2x32xf32> -> vector<20x32xf32>
    %145 = vector.extract_strided_slice %144 {offsets = [0, 0], sizes = [16, 32], strides = [1, 1]} : vector<20x32xf32> to vector<16x32xf32>
    %146 = vector.extract_strided_slice %144 {offsets = [1, 0], sizes = [16, 32], strides = [1, 1]} : vector<20x32xf32> to vector<16x32xf32>
    %147 = vector.extract_strided_slice %144 {offsets = [2, 0], sizes = [16, 32], strides = [1, 1]} : vector<20x32xf32> to vector<16x32xf32>
    %148 = vector.extract_strided_slice %144 {offsets = [3, 0], sizes = [16, 32], strides = [1, 1]} : vector<20x32xf32> to vector<16x32xf32>
    %149 = vector.extract_strided_slice %144 {offsets = [4, 0], sizes = [16, 32], strides = [1, 1]} : vector<20x32xf32> to vector<16x32xf32>
    %150 = tpu.concatenate %145, %146, %147, %148, %149 in 1 : vector<16x32xf32>, vector<16x32xf32>, vector<16x32xf32>, vector<16x32xf32>, vector<16x32xf32> -> vector<16x160xf32>
    %151 = arith.truncf %150 : vector<16x160xf32> to vector<16x160xbf16>
    %c0_78 = arith.constant 0 : index
    %c3 = arith.constant 3 : index
    %c0_79 = arith.constant 0 : index
    %c0_80 = arith.constant 0 : index
    %152 = vector.load %arg7[%c0_78, %c3, %c0_79, %c0_80] : memref<1x4x160x64xbf16, #tpu.memory_space<vmem>>, vector<1x1x160x64xbf16>
    %153 = vector.shape_cast %152 : vector<1x1x160x64xbf16> to vector<160x64xbf16>
    %cst_81 = arith.constant dense<0.000000e+00> : vector<16x64xf32>
    %154 = tpu.matmul %151, %153, %cst_81 {dimension_numbers = #tpu.dot_dimension_numbers<[1], [0], [0], [1], [0, 0, 1, 1], [], []>} : vector<16x160xbf16>, vector<160x64xbf16>, vector<16x64xf32> -> vector<16x64xf32>
    %c0_82 = arith.constant 0 : index
    %c3_83 = arith.constant 3 : index
    %c0_84 = arith.constant 0 : index
    %c0_85 = arith.constant 0 : index
    %155 = vector.load %arg8[%c0_82, %c3_83, %c0_84, %c0_85] : memref<1x4x1x64xf32, #tpu.memory_space<vmem>>, vector<1x1x1x64xf32>
    %156 = vector.shape_cast %155 : vector<1x1x1x64xf32> to vector<1x64xf32>
    %157 = vector.broadcast %156 : vector<1x64xf32> to vector<16x64xf32>
    %158 = arith.addf %154, %157 : vector<16x64xf32>
    %159 = vector.extract_strided_slice %158 {offsets = [0, 0], sizes = [16, 32], strides = [1, 1]} : vector<16x64xf32> to vector<16x32xf32>
    %160 = math.tanh %159 : vector<16x32xf32>
    %161 = vector.extract_strided_slice %158 {offsets = [0, 32], sizes = [16, 32], strides = [1, 1]} : vector<16x64xf32> to vector<16x32xf32>
    %cst_86 = arith.constant 0.000000e+00 : f32
    %162 = vector.broadcast %cst_86 : f32 to vector<16x32xf32>
    %163 = arith.subf %162, %161 : vector<16x32xf32>
    %164 = math.exp %163 : vector<16x32xf32>
    %cst_87 = arith.constant 1.000000e+00 : f32
    %165 = vector.broadcast %cst_87 : f32 to vector<16x32xf32>
    %166 = arith.addf %165, %164 : vector<16x32xf32>
    %cst_88 = arith.constant 1.000000e+00 : f32
    %167 = vector.broadcast %cst_88 : f32 to vector<16x32xf32>
    %168 = arith.divf %167, %166 : vector<16x32xf32>
    %169 = arith.mulf %160, %168 : vector<16x32xf32>
    %170 = arith.truncf %169 : vector<16x32xf32> to vector<16x32xbf16>
    %c0_89 = arith.constant 0 : index
    %c3_90 = arith.constant 3 : index
    %c0_91 = arith.constant 0 : index
    %c0_92 = arith.constant 0 : index
    %171 = vector.load %arg9[%c0_89, %c3_90, %c0_91, %c0_92] : memref<1x4x32x64xbf16, #tpu.memory_space<vmem>>, vector<1x1x32x64xbf16>
    %172 = vector.shape_cast %171 : vector<1x1x32x64xbf16> to vector<32x64xbf16>
    %cst_93 = arith.constant dense<0.000000e+00> : vector<16x64xf32>
    %173 = tpu.matmul %170, %172, %cst_93 {dimension_numbers = #tpu.dot_dimension_numbers<[1], [0], [0], [1], [0, 0, 1, 1], [], []>} : vector<16x32xbf16>, vector<32x64xbf16>, vector<16x64xf32> -> vector<16x64xf32>
    %c0_94 = arith.constant 0 : index
    %c3_95 = arith.constant 3 : index
    %c0_96 = arith.constant 0 : index
    %c0_97 = arith.constant 0 : index
    %174 = vector.load %arg10[%c0_94, %c3_95, %c0_96, %c0_97] : memref<1x4x1x64xf32, #tpu.memory_space<vmem>>, vector<1x1x1x64xf32>
    %175 = vector.shape_cast %174 : vector<1x1x1x64xf32> to vector<1x64xf32>
    %176 = vector.broadcast %175 : vector<1x64xf32> to vector<16x64xf32>
    %177 = arith.addf %173, %176 : vector<16x64xf32>
    %178 = vector.extract_strided_slice %177 {offsets = [0, 32], sizes = [16, 32], strides = [1, 1]} : vector<16x64xf32> to vector<16x32xf32>
    %179 = arith.addf %142, %178 : vector<16x32xf32>
    %180 = vector.broadcast %6 : vector<16x1xf32> to vector<16x32xf32>
    %181 = arith.mulf %179, %180 : vector<16x32xf32>
    %182 = arith.truncf %181 : vector<16x32xf32> to vector<16x32xbf16>
    %c0_98 = arith.constant 0 : index
    %c0_99 = arith.constant 0 : index
    %c0_100 = arith.constant 0 : index
    %183 = vector.load %arg11[%c0_98, %c0_99, %c0_100] : memref<1x32x4xbf16, #tpu.memory_space<vmem>>, vector<1x32x4xbf16>
    %184 = vector.shape_cast %183 : vector<1x32x4xbf16> to vector<32x4xbf16>
    %cst_101 = arith.constant dense<0.000000e+00> : vector<16x4xf32>
    %185 = tpu.matmul %182, %184, %cst_101 {dimension_numbers = #tpu.dot_dimension_numbers<[1], [0], [0], [1], [0, 0, 1, 1], [], []>} : vector<16x32xbf16>, vector<32x4xbf16>, vector<16x4xf32> -> vector<16x4xf32>
    %c0_102 = arith.constant 0 : index
    %c0_103 = arith.constant 0 : index
    %c0_104 = arith.constant 0 : index
    %186 = vector.load %arg12[%c0_102, %c0_103, %c0_104] : memref<1x1x4xf32, #tpu.memory_space<vmem>>, vector<1x1x4xf32>
    %187 = vector.shape_cast %186 : vector<1x1x4xf32> to vector<1x4xf32>
    %188 = vector.broadcast %187 : vector<1x4xf32> to vector<16x4xf32>
    %189 = arith.addf %185, %188 : vector<16x4xf32>
    %190 = vector.broadcast %6 : vector<16x1xf32> to vector<16x4xf32>
    %191 = arith.mulf %189, %190 : vector<16x4xf32>
    %192 = vector.broadcast %6 : vector<16x1xf32> to vector<16x4xf32>
    %193 = arith.mulf %8, %192 : vector<16x4xf32>
    %194 = arith.addf %191, %193 : vector<16x4xf32>
    %195 = tpu.concatenate %7, %194 in 1 : vector<16x4xf32>, vector<16x4xf32> -> vector<16x8xf32>
    %c0_105 = arith.constant 0 : index
    %c0_106 = arith.constant 0 : index
    %196 = vector.load %arg4[%c0_105, %c0_106] : memref<8x8xf32, #tpu.memory_space<vmem>>, vector<8x8xf32>
    %cst_107 = arith.constant dense<0.000000e+00> : vector<16x8xf32>
    %197 = tpu.matmul %195, %196, %cst_107 {dimension_numbers = #tpu.dot_dimension_numbers<[1], [0], [0], [1], [0, 0, 1, 1], [], []>} : vector<16x8xf32>, vector<8x8xf32>, vector<16x8xf32> -> vector<16x8xf32>
    %c0_108 = arith.constant 0 : index
    %c0_109 = arith.constant 0 : index
    %c0_110 = arith.constant 0 : index
    %198 = vector.load %arg13[%c0_108, %c0_109, %c0_110] : memref<1x16x8xf32, #tpu.memory_space<vmem>>, vector<1x16x8xf32>
    %199 = vector.shape_cast %198 : vector<1x16x8xf32> to vector<16x8xf32>
    %200 = vector.shape_cast %197 : vector<16x8xf32> to vector<1x16x8xf32>
    tpu.vector_store %arg13[%c0_108, %c0_109, %c0_110], %200 {strides = array<i32>} : memref<1x16x8xf32, #tpu.memory_space<vmem>>, vector<1x16x8xf32>,
    return
  }
  func.func @transform_0(%arg0: i32, %arg1: i32) -> (i32, i32, i32) {
    %c0_i32 = arith.constant 0 : i32
    %c0_i32_0 = arith.constant 0 : i32
    %c0_i32_1 = arith.constant 0 : i32
    return %arg0, %c0_i32, %c0_i32_0 : i32, i32, i32
  }
  func.func @transform_1(%arg0: i32, %arg1: i32) -> (i32, i32, i32) {
    %c0_i32 = arith.constant 0 : i32
    %c0_i32_0 = arith.constant 0 : i32
    %c0_i32_1 = arith.constant 0 : i32
    return %arg0, %c0_i32, %c0_i32_0 : i32, i32, i32
  }
  func.func @transform_2(%arg0: i32, %arg1: i32) -> (i32, i32) {
    %c0_i32 = arith.constant 0 : i32
    %c0_i32_0 = arith.constant 0 : i32
    %c0_i32_1 = arith.constant 0 : i32
    return %c0_i32, %c0_i32_0 : i32, i32
  }
  func.func @transform_3(%arg0: i32, %arg1: i32) -> (i32, i32, i32) {
    %c0_i32 = arith.constant 0 : i32
    %c0_i32_0 = arith.constant 0 : i32
    %c0_i32_1 = arith.constant 0 : i32
    return %arg1, %c0_i32, %c0_i32_0 : i32, i32, i32
  }
  func.func @transform_4(%arg0: i32, %arg1: i32) -> (i32, i32, i32) {
    %c0_i32 = arith.constant 0 : i32
    %c0_i32_0 = arith.constant 0 : i32
    %c0_i32_1 = arith.constant 0 : i32
    return %arg1, %c0_i32, %c0_i32_0 : i32, i32, i32
  }
  func.func @transform_5(%arg0: i32, %arg1: i32) -> (i32, i32, i32, i32) {
    %c0_i32 = arith.constant 0 : i32
    %c0_i32_0 = arith.constant 0 : i32
    %c0_i32_1 = arith.constant 0 : i32
    %c0_i32_2 = arith.constant 0 : i32
    return %arg1, %c0_i32, %c0_i32_0, %c0_i32_1 : i32, i32, i32, i32
  }
  func.func @transform_6(%arg0: i32, %arg1: i32) -> (i32, i32, i32, i32) {
    %c0_i32 = arith.constant 0 : i32
    %c0_i32_0 = arith.constant 0 : i32
    %c0_i32_1 = arith.constant 0 : i32
    %c0_i32_2 = arith.constant 0 : i32
    return %arg1, %c0_i32, %c0_i32_0, %c0_i32_1 : i32, i32, i32, i32
  }
  func.func @transform_7(%arg0: i32, %arg1: i32) -> (i32, i32, i32, i32) {
    %c0_i32 = arith.constant 0 : i32
    %c0_i32_0 = arith.constant 0 : i32
    %c0_i32_1 = arith.constant 0 : i32
    %c0_i32_2 = arith.constant 0 : i32
    return %arg1, %c0_i32, %c0_i32_0, %c0_i32_1 : i32, i32, i32, i32
  }
  func.func @transform_8(%arg0: i32, %arg1: i32) -> (i32, i32, i32, i32) {
    %c0_i32 = arith.constant 0 : i32
    %c0_i32_0 = arith.constant 0 : i32
    %c0_i32_1 = arith.constant 0 : i32
    %c0_i32_2 = arith.constant 0 : i32
    return %arg1, %c0_i32, %c0_i32_0, %c0_i32_1 : i32, i32, i32, i32
  }
  func.func @transform_9(%arg0: i32, %arg1: i32) -> (i32, i32, i32) {
    %c0_i32 = arith.constant 0 : i32
    %c0_i32_0 = arith.constant 0 : i32
    %c0_i32_1 = arith.constant 0 : i32
    return %arg1, %c0_i32, %c0_i32_0 : i32, i32, i32
  }
  func.func @transform_10(%arg0: i32, %arg1: i32) -> (i32, i32, i32) {
    %c0_i32 = arith.constant 0 : i32
    %c0_i32_0 = arith.constant 0 : i32
    %c0_i32_1 = arith.constant 0 : i32
    return %arg1, %c0_i32, %c0_i32_0 : i32, i32, i32
  }
  func.func @transform_11(%arg0: i32, %arg1: i32) -> (i32, i32, i32) {
    %c0_i32 = arith.constant 0 : i32
    %c0_i32_0 = arith.constant 0 : i32
    %c0_i32_1 = arith.constant 0 : i32
    return %arg0, %c0_i32, %c0_i32_0 : i32, i32, i32
  }
}

</mosaic_0001>

<llo_original>
// kernel: tpu_custom_call.1
$region0: #{tpu_custom_call.1}
  #allocation0 [shape = 'u32[]', space=smem, size = 0x4, offset = 0x4, fixed_abs, tag = 'smem constant byte address 0x4 - core index']
  #allocation1 [shape = 'u32[144,128]{1,0:T(1,128)}', space=vmem, size = 0x12000, scoped, tag = 'internal scratch']
  %s0 = inlined_call_operand.vmem [shape: f32[2,16,8], index: 0, kind: input, shape index: {}]
  %s1 = inlined_call_operand.vmem [shape: f32[2,16,1], index: 1, kind: input, shape index: {}]
  %s2 = inlined_call_operand.vmem [shape: f32[8,8], index: 2, kind: input, shape index: {}]
  %s3 = inlined_call_operand.vmem [shape: bf16[4,4,32], index: 3, kind: input, shape index: {}]
  %s4 = inlined_call_operand.vmem [shape: f32[4,1,32], index: 4, kind: input, shape index: {}]
  %s5 = inlined_call_operand.vmem [shape: bf16[4,4,160,64], index: 5, kind: input, shape index: {}]
  %s6 = inlined_call_operand.vmem [shape: f32[4,4,1,64], index: 6, kind: input, shape index: {}]
  %s7 = inlined_call_operand.vmem [shape: bf16[4,4,32,64], index: 7, kind: input, shape index: {}]
  %s8 = inlined_call_operand.vmem [shape: f32[4,4,1,64], index: 8, kind: input, shape index: {}]
  %s9 = inlined_call_operand.vmem [shape: bf16[4,32,4], index: 9, kind: input, shape index: {}]
  %s10 = inlined_call_operand.vmem [shape: f32[4,1,4], index: 10, kind: input, shape index: {}]
  %s11 = inlined_call_operand.vmem [shape: f32[2,16,8], index: 11, kind: output, shape index: {}]
  %s12 = sld [smem:[#allocation0]]
  $region81: #{tpu_custom_call.1} parent=0
    _
  %s14 = ssub.s32 1, %s12
  %s15 = scalar_select 0, %s14, %s12
  loop: start=0, step=1, limit=10
  $region2: #{tpu_custom_call.1} parent=0 // loop_pre_header
    _
  $region3: #{tpu_custom_call.1} parent=0 // loop_header
    %s17 = sphi 0, %s21
    %p18 = scmp.ge.s32.totalorder %s17, 10
    %s24 = sphi 0, %s36
    %s25 = sphi 0, %s32
    %s26 = sphi 0, %s24
    %s27 = sphi 0, %s25
    %s28 = sphi 0, %s26
    %s29 = sphi 0, %s27
    %s39 = sphi 0, %s41
    %s42 = sphi 0, %s39
    %s43 = sphi 0, %s42
    %s59 = sphi 0, %s43
    %s65 = sphi 0, %s67
    %s68 = sphi 0, %s65
    %s69 = sphi 0, %s68
    %s85 = sphi 0, %s69
    %s89 = sphi 0, %s89
    %s91 = sphi 0, %s89
    %s92 = sphi 0, %s91
    %s106 = sphi 0, %s92
    %s112 = sphi 0, %s114
    %s115 = sphi 0, %s112
    %s116 = sphi 0, %s115
    %s132 = sphi 0, %s116
    %s138 = sphi 0, %s140
    %s141 = sphi 0, %s138
    %s142 = sphi 0, %s141
    %s158 = sphi 0, %s142
    %s164 = sphi 0, %s166
    %s167 = sphi 0, %s164
    %s168 = sphi 0, %s167
    %s184 = sphi 0, %s168
    %s190 = sphi 0, %s192
    %s193 = sphi 0, %s190
    %s194 = sphi 0, %s193
    %s210 = sphi 0, %s194
    %s216 = sphi 0, %s218
    %s219 = sphi 0, %s216
    %s220 = sphi 0, %s219
    %s236 = sphi 0, %s220
    %s242 = sphi 0, %s244
    %s245 = sphi 0, %s242
    %s246 = sphi 0, %s245
    %s262 = sphi 0, %s246
    %s268 = sphi 0, %s270
    %s271 = sphi 0, %s268
    %s272 = sphi 0, %s271
    %s288 = sphi 0, %s272
    %s294 = sphi 0, %s296
    %s297 = sphi 0, %s294
    %s298 = sphi 0, %s297
    %s314 = sphi 0, %s298
    %s320 = sphi 0, %s322
    %s323 = sphi 0, %s320
    %s324 = sphi 0, %s323
    %s340 = sphi 0, %s324
  $region4: #{tpu_custom_call.1} parent=0 // loop_header_branch
    %20 = sbr.rel (%p18) target = $region8
  $region5: #{tpu_custom_call.1} parent=0 // loop_body
    %s22 = ssub.s32 %s17, 1
    %s23 = ssub.s32 %s17, 2
    %s30 = sadd.s32 1, %s25
    %p31 = scmp.ge.s32.totalorder %s30, 4
    %s32 = scalar_select %p31, 0, %s30
    %s33 = sadd.s32 1, %s24
    %s34 = scalar_select %p31, %s33, %s24
    %p35 = scmp.ge.s32.totalorder %s34, 2
    %s36 = scalar_select %p35, 0, %s34
    %s37 = ssub.s32 %s24, %s36
    %p38 = scmp.eq.s32.totalorder %s37, 0
    %s40 = sadd.s32 %s39, 1
    %s41 = scalar_select %p38, %s39, %s40
    %p44 = pneg %p38
    %p45 = scmp.eq.s32.totalorder %s17, 7
    %p46 = por %p44, %p45
    %p47 = scmp.ne.s32.totalorder %s39, %s42
    %p48 = scmp.eq.s32.totalorder %s17, 0
    %p49 = por %p47, %p48
    %p50 = scmp.ne.s32.totalorder %s39, %s42
    %p51 = scmp.eq.s32.totalorder %s22, 7
    %p52 = por %p50, %p51
    %p53 = scmp.ne.s32.totalorder %s42, %s43
    %p54 = scmp.eq.s32.totalorder %s22, 0
    %p55 = por %p53, %p54
    %p56 = scmp.ne.s32.totalorder %s42, %s43
    %p57 = scmp.eq.s32.totalorder %s23, 7
    %p58 = por %p56, %p57
    %p60 = scmp.ne.s32.totalorder %s43, %s59
    %p61 = scmp.eq.s32.totalorder %s23, 0
    %p62 = por %p60, %p61
    %s63 = ssub.s32 %s24, %s36
    %p64 = scmp.eq.s32.totalorder %s63, 0
    %s66 = sadd.s32 %s65, 1
    %s67 = scalar_select %p64, %s65, %s66
    %p70 = pneg %p64
    %p71 = scmp.eq.s32.totalorder %s17, 7
    %p72 = por %p70, %p71
    %p73 = scmp.ne.s32.totalorder %s65, %s68
    %p74 = scmp.eq.s32.totalorder %s17, 0
    %p75 = por %p73, %p74
    %p76 = scmp.ne.s32.totalorder %s65, %s68
    %p77 = scmp.eq.s32.totalorder %s22, 7
    %p78 = por %p76, %p77
    %p79 = scmp.ne.s32.totalorder %s68, %s69
    %p80 = scmp.eq.s32.totalorder %s22, 0
    %p81 = por %p79, %p80
    %p82 = scmp.ne.s32.totalorder %s68, %s69
    %p83 = scmp.eq.s32.totalorder %s23, 7
    %p84 = por %p82, %p83
    %p86 = scmp.ne.s32.totalorder %s69, %s85
    %p87 = scmp.eq.s32.totalorder %s23, 0
    %p88 = por %p86, %p87
    %s90 = sadd.s32 %s89, 1
    %p93 = scmp.eq.s32.totalorder %s17, 7
    %p94 = scmp.ne.s32.totalorder %s89, %s91
    %p95 = scmp.eq.s32.totalorder %s17, 0
    %p96 = por %p94, %p95
    %p97 = scmp.ne.s32.totalorder %s89, %s91
    %p98 = scmp.eq.s32.totalorder %s22, 7
    %p99 = por %p97, %p98
    %p100 = scmp.ne.s32.totalorder %s91, %s92
    %p101 = scmp.eq.s32.totalorder %s22, 0
    %p102 = por %p100, %p101
    %p103 = scmp.ne.s32.totalorder %s91, %s92
    %p104 = scmp.eq.s32.totalorder %s23, 7
    %p105 = por %p103, %p104
    %p107 = scmp.ne.s32.totalorder %s92, %s106
    %p108 = scmp.eq.s32.totalorder %s23, 0
    %p109 = por %p107, %p108
    %s110 = ssub.s32 %s25, %s32
    %p111 = scmp.eq.s32.totalorder %s110, 0
    %s113 = sadd.s32 %s112, 1
    %s114 = scalar_select %p111, %s112, %s113
    %p117 = pneg %p111
    %p118 = scmp.eq.s32.totalorder %s17, 7
    %p119 = por %p117, %p118
    %p120 = scmp.ne.s32.totalorder %s112, %s115
    %p121 = scmp.eq.s32.totalorder %s17, 0
    %p122 = por %p120, %p121
    %p123 = scmp.ne.s32.totalorder %s112, %s115
    %p124 = scmp.eq.s32.totalorder %s22, 7
    %p125 = por %p123, %p124
    %p126 = scmp.ne.s32.totalorder %s115, %s116
    %p127 = scmp.eq.s32.totalorder %s22, 0
    %p128 = por %p126, %p127
    %p129 = scmp.ne.s32.totalorder %s115, %s116
    %p130 = scmp.eq.s32.totalorder %s23, 7
    %p131 = por %p129, %p130
    %p133 = scmp.ne.s32.totalorder %s116, %s132
    %p134 = scmp.eq.s32.totalorder %s23, 0
    %p135 = por %p133, %p134
    %s136 = ssub.s32 %s25, %s32
    %p137 = scmp.eq.s32.totalorder %s136, 0
    %s139 = sadd.s32 %s138, 1
    %s140 = scalar_select %p137, %s138, %s139
    %p143 = pneg %p137
    %p144 = scmp.eq.s32.totalorder %s17, 7
    %p145 = por %p143, %p144
    %p146 = scmp.ne.s32.totalorder %s138, %s141
    %p147 = scmp.eq.s32.totalorder %s17, 0
    %p148 = por %p146, %p147
    %p149 = scmp.ne.s32.totalorder %s138, %s141
    %p150 = scmp.eq.s32.totalorder %s22, 7
    %p151 = por %p149, %p150
    %p152 = scmp.ne.s32.totalorder %s141, %s142
    %p153 = scmp.eq.s32.totalorder %s22, 0
    %p154 = por %p152, %p153
    %p155 = scmp.ne.s32.totalorder %s141, %s142
    %p156 = scmp.eq.s32.totalorder %s23, 7
    %p157 = por %p155, %p156
    %p159 = scmp.ne.s32.totalorder %s142, %s158
    %p160 = scmp.eq.s32.totalorder %s23, 0
    %p161 = por %p159, %p160
    %s162 = ssub.s32 %s25, %s32
    %p163 = scmp.eq.s32.totalorder %s162, 0
    %s165 = sadd.s32 %s164, 1
    %s166 = scalar_select %p163, %s164, %s165
    %p169 = pneg %p163
    %p170 = scmp.eq.s32.totalorder %s17, 7
    %p171 = por %p169, %p170
    %p172 = scmp.ne.s32.totalorder %s164, %s167
    %p173 = scmp.eq.s32.totalorder %s17, 0
    %p174 = por %p172, %p173
    %p175 = scmp.ne.s32.totalorder %s164, %s167
    %p176 = scmp.eq.s32.totalorder %s22, 7
    %p177 = por %p175, %p176
    %p178 = scmp.ne.s32.totalorder %s167, %s168
    %p179 = scmp.eq.s32.totalorder %s22, 0
    %p180 = por %p178, %p179
    %p181 = scmp.ne.s32.totalorder %s167, %s168
    %p182 = scmp.eq.s32.totalorder %s23, 7
    %p183 = por %p181, %p182
    %p185 = scmp.ne.s32.totalorder %s168, %s184
    %p186 = scmp.eq.s32.totalorder %s23, 0
    %p187 = por %p185, %p186
    %s188 = ssub.s32 %s25, %s32
    %p189 = scmp.eq.s32.totalorder %s188, 0
    %s191 = sadd.s32 %s190, 1
    %s192 = scalar_select %p189, %s190, %s191
    %p195 = pneg %p189
    %p196 = scmp.eq.s32.totalorder %s17, 7
    %p197 = por %p195, %p196
    %p198 = scmp.ne.s32.totalorder %s190, %s193
    %p199 = scmp.eq.s32.totalorder %s17, 0
    %p200 = por %p198, %p199
    %p201 = scmp.ne.s32.totalorder %s190, %s193
    %p202 = scmp.eq.s32.totalorder %s22, 7
    %p203 = por %p201, %p202
    %p204 = scmp.ne.s32.totalorder %s193, %s194
    %p205 = scmp.eq.s32.totalorder %s22, 0
    %p206 = por %p204, %p205
    %p207 = scmp.ne.s32.totalorder %s193, %s194
    %p208 = scmp.eq.s32.totalorder %s23, 7
    %p209 = por %p207, %p208
    %p211 = scmp.ne.s32.totalorder %s194, %s210
    %p212 = scmp.eq.s32.totalorder %s23, 0
    %p213 = por %p211, %p212
    %s214 = ssub.s32 %s25, %s32
    %p215 = scmp.eq.s32.totalorder %s214, 0
    %s217 = sadd.s32 %s216, 1
    %s218 = scalar_select %p215, %s216, %s217
    %p221 = pneg %p215
    %p222 = scmp.eq.s32.totalorder %s17, 7
    %p223 = por %p221, %p222
    %p224 = scmp.ne.s32.totalorder %s216, %s219
    %p225 = scmp.eq.s32.totalorder %s17, 0
    %p226 = por %p224, %p225
    %p227 = scmp.ne.s32.totalorder %s216, %s219
    %p228 = scmp.eq.s32.totalorder %s22, 7
    %p229 = por %p227, %p228
    %p230 = scmp.ne.s32.totalorder %s219, %s220
    %p231 = scmp.eq.s32.totalorder %s22, 0
    %p232 = por %p230, %p231
    %p233 = scmp.ne.s32.totalorder %s219, %s220
    %p234 = scmp.eq.s32.totalorder %s23, 7
    %p235 = por %p233, %p234
    %p237 = scmp.ne.s32.totalorder %s220, %s236
    %p238 = scmp.eq.s32.totalorder %s23, 0
    %p239 = por %p237, %p238
    %s240 = ssub.s32 %s25, %s32
    %p241 = scmp.eq.s32.totalorder %s240, 0
    %s243 = sadd.s32 %s242, 1
    %s244 = scalar_select %p241, %s242, %s243
    %p247 = pneg %p241
    %p248 = scmp.eq.s32.totalorder %s17, 7
    %p249 = por %p247, %p248
    %p250 = scmp.ne.s32.totalorder %s242, %s245
    %p251 = scmp.eq.s32.totalorder %s17, 0
    %p252 = por %p250, %p251
    %p253 = scmp.ne.s32.totalorder %s242, %s245
    %p254 = scmp.eq.s32.totalorder %s22, 7
    %p255 = por %p253, %p254
    %p256 = scmp.ne.s32.totalorder %s245, %s246
    %p257 = scmp.eq.s32.totalorder %s22, 0
    %p258 = por %p256, %p257
    %p259 = scmp.ne.s32.totalorder %s245, %s246
    %p260 = scmp.eq.s32.totalorder %s23, 7
    %p261 = por %p259, %p260
    %p263 = scmp.ne.s32.totalorder %s246, %s262
    %p264 = scmp.eq.s32.totalorder %s23, 0
    %p265 = por %p263, %p264
    %s266 = ssub.s32 %s25, %s32
    %p267 = scmp.eq.s32.totalorder %s266, 0
    %s269 = sadd.s32 %s268, 1
    %s270 = scalar_select %p267, %s268, %s269
    %p273 = pneg %p267
    %p274 = scmp.eq.s32.totalorder %s17, 7
    %p275 = por %p273, %p274
    %p276 = scmp.ne.s32.totalorder %s268, %s271
    %p277 = scmp.eq.s32.totalorder %s17, 0
    %p278 = por %p276, %p277
    %p279 = scmp.ne.s32.totalorder %s268, %s271
    %p280 = scmp.eq.s32.totalorder %s22, 7
    %p281 = por %p279, %p280
    %p282 = scmp.ne.s32.totalorder %s271, %s272
    %p283 = scmp.eq.s32.totalorder %s22, 0
    %p284 = por %p282, %p283
    %p285 = scmp.ne.s32.totalorder %s271, %s272
    %p286 = scmp.eq.s32.totalorder %s23, 7
    %p287 = por %p285, %p286
    %p289 = scmp.ne.s32.totalorder %s272, %s288
    %p290 = scmp.eq.s32.totalorder %s23, 0
    %p291 = por %p289, %p290
    %s292 = ssub.s32 %s25, %s32
    %p293 = scmp.eq.s32.totalorder %s292, 0
    %s295 = sadd.s32 %s294, 1
    %s296 = scalar_select %p293, %s294, %s295
    %p299 = pneg %p293
    %p300 = scmp.eq.s32.totalorder %s17, 7
    %p301 = por %p299, %p300
    %p302 = scmp.ne.s32.totalorder %s294, %s297
    %p303 = scmp.eq.s32.totalorder %s17, 0
    %p304 = por %p302, %p303
    %p305 = scmp.ne.s32.totalorder %s294, %s297
    %p306 = scmp.eq.s32.totalorder %s22, 7
    %p307 = por %p305, %p306
    %p308 = scmp.ne.s32.totalorder %s297, %s298
    %p309 = scmp.eq.s32.totalorder %s22, 0
    %p310 = por %p308, %p309
    %p311 = scmp.ne.s32.totalorder %s297, %s298
    %p312 = scmp.eq.s32.totalorder %s23, 7
    %p313 = por %p311, %p312
    %p315 = scmp.ne.s32.totalorder %s298, %s314
    %p316 = scmp.eq.s32.totalorder %s23, 0
    %p317 = por %p315, %p316
    %s318 = ssub.s32 %s24, %s36
    %p319 = scmp.eq.s32.totalorder %s318, 0
    %s321 = sadd.s32 %s320, 1
    %s322 = scalar_select %p319, %s320, %s321
    %p325 = pneg %p319
    %p326 = scmp.eq.s32.totalorder %s17, 7
    %p327 = por %p325, %p326
    %p328 = scmp.ne.s32.totalorder %s320, %s323
    %p329 = scmp.eq.s32.totalorder %s17, 0
    %p330 = por %p328, %p329
    %p331 = scmp.ne.s32.totalorder %s320, %s323
    %p332 = scmp.eq.s32.totalorder %s22, 7
    %p333 = por %p331, %p332
    %p334 = scmp.ne.s32.totalorder %s323, %s324
    %p335 = scmp.eq.s32.totalorder %s22, 0
    %p336 = por %p334, %p335
    %p337 = scmp.ne.s32.totalorder %s323, %s324
    %p338 = scmp.eq.s32.totalorder %s23, 7
    %p339 = por %p337, %p338
    %p341 = scmp.ne.s32.totalorder %s324, %s340
    %p342 = scmp.eq.s32.totalorder %s23, 0
    %p343 = por %p341, %p342
    %p344 = scmp.le.s32.totalorder 1, %s17
    %p345 = scmp.lt.s32.totalorder %s17, 9
    %p346 = pnand %p344, %p345
    %p347 = pneg %p346
    // Predicated region
    $region9: #{tpu_custom_call.1} parent=5 // pred_check
      _
    $region10: #{tpu_custom_call.1} parent=5 // pred_check_branch
      %349 = sbr.rel (%p346) target = $region12
    $region11: #{tpu_custom_call.1} parent=5 // pred_region
      %s350 = ssub.s32 %s17, 1
      // Predicated region
      $region13: #{tpu_custom_call.1} parent=11 // pred_check
        %p351 = pneg %p102
      $region14: #{tpu_custom_call.1} parent=11 // pred_check_branch
        %353 = sbr.rel (%p351) target = $region16
      $region15: #{tpu_custom_call.1} parent=11 // pred_region
        _
      $region16: #{tpu_custom_call.1} parent=11 // pred_fallthru
        _
    $region12: #{tpu_custom_call.1} parent=5 // pred_fallthru
      _
    %p354 = scmp.lt.s32.totalorder %s17, 8
    // Predicated region
    $region17: #{tpu_custom_call.1} parent=5 // pred_check
      %p355 = pneg %p354
    $region18: #{tpu_custom_call.1} parent=5 // pred_check_branch
      %357 = sbr.rel (%p355) target = $region20
    $region19: #{tpu_custom_call.1} parent=5 // pred_region
      // Predicated region
      $region21: #{tpu_custom_call.1} parent=19 // pred_check
        %p358 = pneg %p49
      $region22: #{tpu_custom_call.1} parent=19 // pred_check_branch
        %360 = sbr.rel (%p358) target = $region24
      $region23: #{tpu_custom_call.1} parent=19 // pred_region
        %p361 = scmp.lt.s32.totalorder %s24, 1
        %s362 = scalar_select %p361, %s24, 1
        %s363 = smul.addr %s362, 2
        %s364 = smul.addr %s363, 8
        %s365 = scalar_lea.vmem %s0, %s364
      $region24: #{tpu_custom_call.1} parent=19 // pred_fallthru
        _
      // Predicated region
      $region25: #{tpu_custom_call.1} parent=19 // pred_check
        %p366 = pneg %p75
      $region26: #{tpu_custom_call.1} parent=19 // pred_check_branch
        %368 = sbr.rel (%p366) target = $region28
      $region27: #{tpu_custom_call.1} parent=19 // pred_region
        %p369 = scmp.lt.s32.totalorder %s24, 1
        %s370 = scalar_select %p369, %s24, 1
        %s371 = smul.addr %s370, 2
        %s372 = smul.addr %s371, 8
        %s373 = scalar_lea.vmem %s1, %s372
      $region28: #{tpu_custom_call.1} parent=19 // pred_fallthru
        _
      // Predicated region
      $region29: #{tpu_custom_call.1} parent=19 // pred_check
        %p374 = pneg %p122
      $region30: #{tpu_custom_call.1} parent=19 // pred_check_branch
        %376 = sbr.rel (%p374) target = $region32
      $region31: #{tpu_custom_call.1} parent=19 // pred_region
        %p377 = scmp.lt.s32.totalorder %s25, 3
        %s378 = scalar_select %p377, %s25, 3
        %s379 = smul.addr %s378, 2
        %s380 = scalar_lea.vmem %s3, %s379
      $region32: #{tpu_custom_call.1} parent=19 // pred_fallthru
        _
      // Predicated region
      $region33: #{tpu_custom_call.1} parent=19 // pred_check
        %p381 = pneg %p148
      $region34: #{tpu_custom_call.1} parent=19 // pred_check_branch
        %383 = sbr.rel (%p381) target = $region36
      $region35: #{tpu_custom_call.1} parent=19 // pred_region
        %p384 = scmp.lt.s32.totalorder %s25, 3
        %s385 = scalar_select %p384, %s25, 3
        %s386 = scalar_lea.vmem %s4, %s385
      $region36: #{tpu_custom_call.1} parent=19 // pred_fallthru
        _
      // Predicated region
      $region37: #{tpu_custom_call.1} parent=19 // pred_check
        %p387 = pneg %p174
      $region38: #{tpu_custom_call.1} parent=19 // pred_check_branch
        %389 = sbr.rel (%p387) target = $region40
      $region39: #{tpu_custom_call.1} parent=19 // pred_region
        %p390 = scmp.lt.s32.totalorder %s25, 3
        %s391 = scalar_select %p390, %s25, 3
        %s392 = smul.addr %s391, 80
        %s393 = smul.addr %s392, 4
        %s394 = scalar_lea.vmem %s5, %s393
      $region40: #{tpu_custom_call.1} parent=19 // pred_fallthru
        _
      // Predicated region
      $region41: #{tpu_custom_call.1} parent=19 // pred_check
        %p395 = pneg %p200
      $region42: #{tpu_custom_call.1} parent=19 // pred_check_branch
        %397 = sbr.rel (%p395) target = $region44
      $region43: #{tpu_custom_call.1} parent=19 // pred_region
        %p398 = scmp.lt.s32.totalorder %s25, 3
        %s399 = scalar_select %p398, %s25, 3
        %s400 = smul.addr %s399, 4
        %s401 = scalar_lea.vmem %s6, %s400
      $region44: #{tpu_custom_call.1} parent=19 // pred_fallthru
        _
      // Predicated region
      $region45: #{tpu_custom_call.1} parent=19 // pred_check
        %p402 = pneg %p226
      $region46: #{tpu_custom_call.1} parent=19 // pred_check_branch
        %404 = sbr.rel (%p402) target = $region48
      $region47: #{tpu_custom_call.1} parent=19 // pred_region
        %p405 = scmp.lt.s32.totalorder %s25, 3
        %s406 = scalar_select %p405, %s25, 3
        %s407 = smul.addr %s406, 16
        %s408 = smul.addr %s407, 4
        %s409 = scalar_lea.vmem %s7, %s408
      $region48: #{tpu_custom_call.1} parent=19 // pred_fallthru
        _
      // Predicated region
      $region49: #{tpu_custom_call.1} parent=19 // pred_check
        %p410 = pneg %p252
      $region50: #{tpu_custom_call.1} parent=19 // pred_check_branch
        %412 = sbr.rel (%p410) target = $region52
      $region51: #{tpu_custom_call.1} parent=19 // pred_region
        %p413 = scmp.lt.s32.totalorder %s25, 3
        %s414 = scalar_select %p413, %s25, 3
        %s415 = smul.addr %s414, 4
        %s416 = scalar_lea.vmem %s8, %s415
      $region52: #{tpu_custom_call.1} parent=19 // pred_fallthru
        _
      // Predicated region
      $region53: #{tpu_custom_call.1} parent=19 // pred_check
        %p417 = pneg %p278
      $region54: #{tpu_custom_call.1} parent=19 // pred_check_branch
        %419 = sbr.rel (%p417) target = $region56
      $region55: #{tpu_custom_call.1} parent=19 // pred_region
        %p420 = scmp.lt.s32.totalorder %s25, 3
        %s421 = scalar_select %p420, %s25, 3
        %s422 = smul.addr %s421, 4
        %s423 = smul.addr %s422, 4
        %s424 = scalar_lea.vmem %s9, %s423
      $region56: #{tpu_custom_call.1} parent=19 // pred_fallthru
        _
      // Predicated region
      $region57: #{tpu_custom_call.1} parent=19 // pred_check
        %p425 = pneg %p304
      $region58: #{tpu_custom_call.1} parent=19 // pred_check_branch
        %427 = sbr.rel (%p425) target = $region60
      $region59: #{tpu_custom_call.1} parent=19 // pred_region
        %p428 = scmp.lt.s32.totalorder %s25, 3
        %s429 = scalar_select %p428, %s25, 3
        %s430 = scalar_lea.vmem %s10, %s429
      $region60: #{tpu_custom_call.1} parent=19 // pred_fallthru
        _
    $region20: #{tpu_custom_call.1} parent=5 // pred_fallthru
      _
    %p431 = scmp.le.s32.totalorder 1, %s17
    %p432 = scmp.lt.s32.totalorder %s17, 9
    %p433 = pnand %p431, %p432
    %p434 = pneg %p433
    // Predicated region
    $region61: #{tpu_custom_call.1} parent=5 // pred_check
      _
    $region62: #{tpu_custom_call.1} parent=5 // pred_check_branch
      %436 = sbr.rel (%p433) target = $region64
    $region63: #{tpu_custom_call.1} parent=5 // pred_region
      %s437 = ssub.s32 %s17, 1
      %p438 = scmp.lt.s32.totalorder %s26, 1
      %s439 = scalar_select %p438, %s26, 1
      %s440 = smul.addr %s439, 2
      %s441 = smul.addr %s440, 8
      %s442 = scalar_lea.vmem %s0, %s441
      %p443 = pneg %p55
      %p444 = pneg %p52
      %p445 = scmp.lt.s32.totalorder %s26, 1
      %s446 = scalar_select %p445, %s26, 1
      %s447 = smul.addr %s446, 2
      %s448 = smul.addr %s447, 8
      %s449 = scalar_lea.vmem %s1, %s448
      %p450 = pneg %p81
      %p451 = pneg %p78
      %p452 = pneg %p102
      %p453 = pneg %p99
      %p454 = scmp.lt.s32.totalorder %s27, 3
      %s455 = scalar_select %p454, %s27, 3
      %s456 = smul.addr %s455, 2
      %s457 = scalar_lea.vmem %s3, %s456
      %p458 = pneg %p128
      %p459 = pneg %p125
      %p460 = scmp.lt.s32.totalorder %s27, 3
      %s461 = scalar_select %p460, %s27, 3
      %s462 = scalar_lea.vmem %s4, %s461
      %p463 = pneg %p154
      %p464 = pneg %p151
      %p465 = scmp.lt.s32.totalorder %s27, 3
      %s466 = scalar_select %p465, %s27, 3
      %s467 = smul.addr %s466, 80
      %s468 = smul.addr %s467, 4
      %s469 = scalar_lea.vmem %s5, %s468
      %p470 = pneg %p180
      %p471 = pneg %p177
      %p472 = scmp.lt.s32.totalorder %s27, 3
      %s473 = scalar_select %p472, %s27, 3
      %s474 = smul.addr %s473, 4
      %s475 = scalar_lea.vmem %s6, %s474
      %p476 = pneg %p206
      %p477 = pneg %p203
      %p478 = scmp.lt.s32.totalorder %s27, 3
      %s479 = scalar_select %p478, %s27, 3
      %s480 = smul.addr %s479, 16
      %s481 = smul.addr %s480, 4
      %s482 = scalar_lea.vmem %s7, %s481
      %p483 = pneg %p232
      %p484 = pneg %p229
      %p485 = scmp.lt.s32.totalorder %s27, 3
      %s486 = scalar_select %p485, %s27, 3
      %s487 = smul.addr %s486, 4
      %s488 = scalar_lea.vmem %s8, %s487
      %p489 = pneg %p258
      %p490 = pneg %p255
      %p491 = scmp.lt.s32.totalorder %s27, 3
      %s492 = scalar_select %p491, %s27, 3
      %s493 = smul.addr %s492, 4
      %s494 = smul.addr %s493, 4
      %s495 = scalar_lea.vmem %s9, %s494
      %p496 = pneg %p284
      %p497 = pneg %p281
      %p498 = scmp.lt.s32.totalorder %s27, 3
      %s499 = scalar_select %p498, %s27, 3
      %s500 = scalar_lea.vmem %s10, %s499
      %p501 = pneg %p310
      %p502 = pneg %p307
      %p503 = pneg %p336
      %p504 = pneg %p333
      %p505 = scmp.lt.s32.totalorder %s26, 1
      %s506 = scalar_select %p505, %s26, 1
      %s507 = smul.addr %s506, 2
      %s508 = smul.addr %s507, 8
      %s509 = scalar_lea.vmem %s11, %s508
      %p510 = scmp.lt.s32.totalorder %s26, 1
      %s511 = scalar_select %p510, %s26, 1
      %s512 = smul.addr %s511, 2
      %s513 = smul.addr %s512, 8
      %s514 = scalar_lea.vmem %s0, %s513
      %p515 = scmp.lt.s32.totalorder %s26, 1
      %s516 = scalar_select %p515, %s26, 1
      %s517 = smul.addr %s516, 2
      %s518 = smul.addr %s517, 8
      %s519 = scalar_lea.vmem %s1, %s518
      %p520 = scmp.lt.s32.totalorder %s27, 3
      %s521 = scalar_select %p520, %s27, 3
      %s522 = smul.addr %s521, 2
      %s523 = scalar_lea.vmem %s3, %s522
      %p524 = scmp.lt.s32.totalorder %s27, 3
      %s525 = scalar_select %p524, %s27, 3
      %s526 = scalar_lea.vmem %s4, %s525
      %p527 = scmp.lt.s32.totalorder %s27, 3
      %s528 = scalar_select %p527, %s27, 3
      %s529 = smul.addr %s528, 80
      %s530 = smul.addr %s529, 4
      %s531 = scalar_lea.vmem %s5, %s530
      %p532 = scmp.lt.s32.totalorder %s27, 3
      %s533 = scalar_select %p532, %s27, 3
      %s534 = smul.addr %s533, 4
      %s535 = scalar_lea.vmem %s6, %s534
      %p536 = scmp.lt.s32.totalorder %s27, 3
      %s537 = scalar_select %p536, %s27, 3
      %s538 = smul.addr %s537, 16
      %s539 = smul.addr %s538, 4
      %s540 = scalar_lea.vmem %s7, %s539
      %p541 = scmp.lt.s32.totalorder %s27, 3
      %s542 = scalar_select %p541, %s27, 3
      %s543 = smul.addr %s542, 4
      %s544 = scalar_lea.vmem %s8, %s543
      %p545 = scmp.lt.s32.totalorder %s27, 3
      %s546 = scalar_select %p545, %s27, 3
      %s547 = smul.addr %s546, 4
      %s548 = smul.addr %s547, 4
      %s549 = scalar_lea.vmem %s9, %s548
      %p550 = scmp.lt.s32.totalorder %s27, 3
      %s551 = scalar_select %p550, %s27, 3
      %s552 = scalar_lea.vmem %s10, %s551
      %p553 = scmp.lt.s32.totalorder %s26, 1
      %s554 = scalar_select %p553, %s26, 1
      %s555 = smul.addr %s554, 2
      %s556 = smul.addr %s555, 8
      %s557 = scalar_lea.vmem %s11, %s556
      %p559 = scmp.eq.s32.totalorder %s27, 0
      // Predicated region
      $region65: #{tpu_custom_call.1} parent=63 // pred_check
        %p560 = pneg %p559
      $region66: #{tpu_custom_call.1} parent=63 // pred_check_branch
        %562 = sbr.rel (%p560) target = $region68
      $region67: #{tpu_custom_call.1} parent=63 // pred_region
        %v563 = vld [vmem:[%s514] sm:$0xff]
        %v564 = vld [vmem:[%s514 + $0x8] sm:$0xff]
        %vm565 = vcmask 64512
        %566 = vst.msk [vmem:[%s557] sm:$0xff] %vm565, %v563
        %567 = vst.msk [vmem:[%s557 + $0x8] sm:$0xff] %vm565, %v564
      $region68: #{tpu_custom_call.1} parent=63 // pred_fallthru
        _
      %v568 = vld [vmem:[%s557] sm:$0xff]
      %v569 = vld [vmem:[%s557 + $0x8] sm:$0xff]
      %v570 = vld [vmem:[%s519] sm:$0xff]
      %v571 = vld [vmem:[%s519 + $0x8] sm:$0xff]
      %v572 = vpack.c.bf16 %v569, %v568
      %v573 = vld [vmem:[%s523] sm:$0x3]
      %v574 = vld [vmem:[%s526] sm:$0x1]
      %v576 = vlaneseq
      %v577 = vshrl.u32 %v576, 7
      %v578 = vsub.s32 0, %v577
      %v579 = vrot.slane %v574, %v578
      %vm581 = vcmask 31744
      %v583 = vsel %vm581, %v572, 0
      %vm585 = vcmask 1041408
      %v587 = vsel %vm585, %v573, 0
      %589 = vmatprep.subr.bf16.mxu0 0
      %590 = vmatpush1.bf16.msra.mxu0 %v587
      %591 = vmatprep.subr.bf16.mxu0 0
      %592 = vmatpush1.bf16.msra.mxu0 0
      %593 = vmatprep.subr.bf16.mxu0 0
      %594 = vmatpush1.bf16.msra.mxu0 0
      %595 = vmatprep.subr.bf16.mxu0 0
      %596 = vmatpush1.bf16.msra.mxu0 0
      %597 = vmatprep.subr.bf16.mxu0 0
      %598 = vmatpush1.bf16.msra.mxu0 0
      %599 = vmatprep.subr.bf16.mxu0 0
      %600 = vmatpush1.bf16.msra.mxu0 0
      %601 = vmatprep.subr.bf16.mxu0 0
      %602 = vmatpush1.bf16.msra.mxu0 0
      %603 = vmatprep.subr.bf16.mxu0 0
      %604 = vmatpush1.bf16.msra.mxu0 0
      %605 = vmatprep.subr.bf16.mxu0 0
      %606 = vmatpush1.bf16.msra.mxu0 0
      %607 = vmatprep.subr.bf16.mxu0 0
      %608 = vmatpush1.bf16.msra.mxu0 0
      %609 = vmatprep.subr.bf16.mxu0 0
      %610 = vmatpush1.bf16.msra.mxu0 0
      %611 = vmatprep.subr.bf16.mxu0 0
      %612 = vmatpush1.bf16.msra.mxu0 0
      %613 = vmatprep.subr.bf16.mxu0 0
      %614 = vmatpush1.bf16.msra.mxu0 0
      %615 = vmatprep.subr.bf16.mxu0 0
      %616 = vmatpush1.bf16.msra.mxu0 0
      %617 = vmatprep.subr.bf16.mxu0 0
      %618 = vmatpush1.bf16.msra.mxu0 0
      %619 = vmatprep.subr.bf16.mxu0 0
      %620 = vmatpush1.bf16.msra.mxu0 0
      %621 = vmatprep.mubr.bf16.mxu0 0
      %622 = vmatmul.mubr.bf16.gmra.mrb[0].mxu0 %v583
      %v623 = vpop.f32.mrb[0].mxu0
      %v624 = vadd.f32 %v579, %v623
      %v625 = vpop.f32.mrb[0].mxu0
      %v626 = vpop.f32.mrb[0].mxu0
      %v627 = vadd.f32 %v579, %v626
      %v628 = vpop.f32.mrb[0].mxu0
      %629 = vdwg.mxu0
      %631 = vset.pattern.permute.xlu0 0
      %632 = vperm.xlu0 %631, %v570
      %v633 = vpop.permute.xlu0 %632
      %636 = vset.pattern.permute.xlu0 0
      %637 = vperm.xlu0 %636, %v571
      %v638 = vpop.permute.xlu0 %637
      %v640 = vmul.f32 %v624, %v633
      %v641 = vmul.f32 %v627, %v638
      %v644 = vrot.slane %v640, 6
      %v645 = vrot.slane %v641, 6
      %v646 = vsel %vm585, %v644, %v645
      %v650 = vsel %vm585, 0.0, %v644
      %v651 = vsel %vm585, %v645, 0.0
      %vm654 = vcmask 1046528
      %v655 = vrot.slane %v650, 1
      %v656 = vrot.slane %v646, 1
      %v657 = vsel %vm654, %v655, %v656
      %v658 = vrot.slane %v651, 1
      %v659 = vsel %vm654, %v656, %v658
      %660 = vrot.lane.b32.xlu0 %v657, 32
      %v661 = vpop.permute.xlu0 %660
      %662 = vrot.lane.b32.xlu0 %v659, 32
      %v663 = vpop.permute.xlu0 %662
      %vm666 = vcmask 1045504
      %v667 = vrot.slane %v650, 2
      %v668 = vrot.slane %v646, 2
      %v669 = vsel %vm666, %v667, %v668
      %v670 = vrot.slane %v651, 2
      %v671 = vsel %vm666, %v668, %v670
      %672 = vrot.lane.b32.xlu0 %v669, 64
      %v673 = vpop.permute.xlu0 %672
      %674 = vrot.lane.b32.xlu0 %v671, 64
      %v675 = vpop.permute.xlu0 %674
      %vm678 = vcmask 1044480
      %v679 = vrot.slane %v650, 3
      %v680 = vrot.slane %v646, 3
      %v681 = vsel %vm678, %v679, %v680
      %v682 = vrot.slane %v651, 3
      %v683 = vsel %vm678, %v680, %v682
      %684 = vrot.lane.b32.xlu0 %v681, 96
      %v685 = vpop.permute.xlu0 %684
      %686 = vrot.lane.b32.xlu0 %v683, 96
      %v687 = vpop.permute.xlu0 %686
      %vm690 = vcmask 1043456
      %v691 = vrot.slane %v650, 4
      %v692 = vrot.slane %v646, 4
      %v693 = vsel %vm690, %v691, %v692
      %v694 = vrot.slane %v651, 4
      %v695 = vsel %vm690, %v692, %v694
      %vm698 = vcmask 261120
      %v699 = vsel %vm698, %v650, %v661
      %v700 = vsel %vm698, %v646, %v663
      %vm701 = vcmask 523264
      %v702 = vsel %vm701, %v699, %v673
      %v703 = vsel %vm701, %v700, %v675
      %vm704 = vcmask 785408
      %v705 = vsel %vm704, %v702, %v685
      %v706 = vsel %vm704, %v703, %v687
      %v707 = vpack.c.bf16 %v706, %v705
      %v708 = vpack.c.bf16 %v695, %v693
      %v709 = vld [vmem:[%s531] sm:$0xf]
      %v710 = vld [vmem:[%s531 + $0x4] sm:$0xf]
      %v711 = vld [vmem:[%s531 + $0x8] sm:$0xf]
      %v712 = vld [vmem:[%s531 + $0xc] sm:$0xf]
      %v713 = vld [vmem:[%s531 + $0x10] sm:$0xf]
      %v714 = vld [vmem:[%s531 + $0x14] sm:$0xf]
      %v715 = vld [vmem:[%s531 + $0x18] sm:$0xf]
      %v716 = vld [vmem:[%s531 + $0x1c] sm:$0xf]
      %v717 = vld [vmem:[%s531 + $0x20] sm:$0xf]
      %v718 = vld [vmem:[%s531 + $0x24] sm:$0xf]
      %v719 = vld [vmem:[%s531 + $0x28] sm:$0xf]
      %v720 = vld [vmem:[%s531 + $0x2c] sm:$0xf]
      %v721 = vld [vmem:[%s531 + $0x30] sm:$0xf]
      %v722 = vld [vmem:[%s531 + $0x34] sm:$0xf]
      %v723 = vld [vmem:[%s531 + $0x38] sm:$0xf]
      %v724 = vld [vmem:[%s531 + $0x3c] sm:$0xf]
      %v725 = vld [vmem:[%s531 + $0x40] sm:$0xf]
      %v726 = vld [vmem:[%s531 + $0x44] sm:$0xf]
      %v727 = vld [vmem:[%s531 + $0x48] sm:$0xf]
      %v728 = vld [vmem:[%s531 + $0x4c] sm:$0xf]
      %v729 = vld [vmem:[%s535] sm:$0x1]
      %v731 = vlaneseq
      %v732 = vshrl.u32 %v731, 7
      %v733 = vsub.s32 0, %v732
      %v734 = vrot.slane %v729, %v733
      %v756 = vunpack.c.l.b16 %v709
      %v757 = vunpack.c.l.b16 %v710
      %v758 = vunpack.c.l.b16 %v711
      %v759 = vunpack.c.l.b16 %v712
      %v760 = vunpack.c.l.b16 %v713
      %v761 = vunpack.c.l.b16 %v714
      %v762 = vunpack.c.l.b16 %v715
      %v763 = vunpack.c.l.b16 %v716
      %v764 = vunpack.c.l.b16 %v717
      %v765 = vunpack.c.l.b16 %v718
      %v766 = vunpack.c.l.b16 %v719
      %v767 = vunpack.c.l.b16 %v720
      %v768 = vunpack.c.l.b16 %v721
      %v769 = vunpack.c.l.b16 %v722
      %v770 = vunpack.c.l.b16 %v723
      %v771 = vunpack.c.l.b16 %v724
      %v772 = vunpack.c.l.b16 %v725
      %v773 = vunpack.c.l.b16 %v726
      %v774 = vunpack.c.l.b16 %v727
      %v775 = vunpack.c.l.b16 %v728
      %v776 = vpack.c.b16 %v757, %v756
      %v777 = vpack.c.b16 %v759, %v758
      %v778 = vpack.c.b16 %v761, %v760
      %v779 = vpack.c.b16 %v763, %v762
      %v780 = vpack.c.b16 %v765, %v764
      %v781 = vpack.c.b16 %v767, %v766
      %v782 = vpack.c.b16 %v769, %v768
      %v783 = vpack.c.b16 %v771, %v770
      %v784 = vpack.c.b16 %v773, %v772
      %v785 = vpack.c.b16 %v775, %v774
      %v797 = vsel %vm698, %v708, 0
      %799 = vmatprep.subr.bf16.mxu0 0
      %800 = vmatpush1.bf16.msra.mxu0 %v776
      %801 = vmatprep.subr.bf16.mxu0 0
      %802 = vmatpush1.bf16.msra.mxu0 %v777
      %803 = vmatprep.subr.bf16.mxu0 0
      %804 = vmatpush1.bf16.msra.mxu0 %v778
      %805 = vmatprep.subr.bf16.mxu0 0
      %806 = vmatpush1.bf16.msra.mxu0 %v779
      %807 = vmatprep.subr.bf16.mxu0 0
      %808 = vmatpush1.bf16.msra.mxu0 %v780
      %809 = vmatprep.subr.bf16.mxu0 0
      %810 = vmatpush1.bf16.msra.mxu0 %v781
      %811 = vmatprep.subr.bf16.mxu0 0
      %812 = vmatpush1.bf16.msra.mxu0 %v782
      %813 = vmatprep.subr.bf16.mxu0 0
      %814 = vmatpush1.bf16.msra.mxu0 %v783
      %815 = vmatprep.subr.bf16.mxu0 0
      %816 = vmatpush1.bf16.msra.mxu0 %v784
      %817 = vmatprep.subr.bf16.mxu0 0
      %818 = vmatpush1.bf16.msra.mxu0 %v785
      %819 = vmatprep.subr.bf16.mxu0 0
      %820 = vmatpush1.bf16.msra.mxu0 0
      %821 = vmatprep.subr.bf16.mxu0 0
      %822 = vmatpush1.bf16.msra.mxu0 0
      %823 = vmatprep.subr.bf16.mxu0 0
      %824 = vmatpush1.bf16.msra.mxu0 0
      %825 = vmatprep.subr.bf16.mxu0 0
      %826 = vmatpush1.bf16.msra.mxu0 0
      %827 = vmatprep.subr.bf16.mxu0 0
      %828 = vmatpush1.bf16.msra.mxu0 0
      %829 = vmatprep.subr.bf16.mxu0 0
      %830 = vmatpush1.bf16.msra.mxu0 0
      %831 = vmatprep.mubr.bf16.mxu0 %v797
      %832 = vmatmul.mubr.bf16.gmra.mrb[0].mxu0 %v707
      %v833 = vpop.f32.mrb[0].mxu0
      %v834 = vadd.f32 %v734, %v833
      %v835 = vpop.f32.mrb[0].mxu0
      %v836 = vpop.f32.mrb[0].mxu0
      %v837 = vadd.f32 %v734, %v836
      %v838 = vpop.f32.mrb[0].mxu0
      %839 = vdwg.mxu0
      %v840 = vtanh.pop %v834
      %v841 = vtanh.pop %v837
      %v842 = vsub.f32 0.0, %v834
      %v843 = vsub.f32 0.0, %v837
      %v844 = vmul.f32 %v842, 1.442695
      %v845 = vpow.pop %v844
      %v846 = vmul.f32 %v843, 1.442695
      %v847 = vpow.pop %v846
      %v848 = vadd.f32 %v845, 1.0
      %v849 = vadd.f32 %v847, 1.0
      %v850 = vrcp.pop %v848
      %v851 = vmul.f32 1.0, %v850
      %v852 = vrcp.pop %v849
      %v853 = vmul.f32 1.0, %v852
      %856 = vrot.lane.b32.xlu0 %v851, 96
      %v857 = vpop.permute.xlu0 %856
      %858 = vrot.lane.b32.xlu0 %v853, 96
      %v859 = vpop.permute.xlu0 %858
      %v862 = vmul.f32 %v840, %v857
      %v863 = vmul.f32 %v841, %v859
      %v864 = vpack.c.bf16 %v863, %v862
      %v865 = vld [vmem:[%s540] sm:$0xf]
      %v866 = vld [vmem:[%s540 + $0x4] sm:$0xf]
      %v867 = vld [vmem:[%s540 + $0x8] sm:$0xf]
      %v868 = vld [vmem:[%s540 + $0xc] sm:$0xf]
      %v869 = vld [vmem:[%s544] sm:$0x1]
      %v871 = vlaneseq
      %v872 = vshrl.u32 %v871, 7
      %v873 = vsub.s32 0, %v872
      %v874 = vrot.slane %v869, %v873
      %v880 = vunpack.c.l.b16 %v865
      %v881 = vunpack.c.l.b16 %v866
      %v882 = vunpack.c.l.b16 %v867
      %v883 = vunpack.c.l.b16 %v868
      %v884 = vpack.c.b16 %v881, %v880
      %v885 = vpack.c.b16 %v883, %v882
      %v889 = vsel %vm698, %v864, 0
      %891 = vmatprep.subr.bf16.mxu0 0
      %892 = vmatpush1.bf16.msra.mxu0 %v884
      %893 = vmatprep.subr.bf16.mxu0 0
      %894 = vmatpush1.bf16.msra.mxu0 %v885
      %895 = vmatprep.subr.bf16.mxu0 0
      %896 = vmatpush1.bf16.msra.mxu0 0
      %897 = vmatprep.subr.bf16.mxu0 0
      %898 = vmatpush1.bf16.msra.mxu0 0
      %899 = vmatprep.subr.bf16.mxu0 0
      %900 = vmatpush1.bf16.msra.mxu0 0
      %901 = vmatprep.subr.bf16.mxu0 0
      %902 = vmatpush1.bf16.msra.mxu0 0
      %903 = vmatprep.subr.bf16.mxu0 0
      %904 = vmatpush1.bf16.msra.mxu0 0
      %905 = vmatprep.subr.bf16.mxu0 0
      %906 = vmatpush1.bf16.msra.mxu0 0
      %907 = vmatprep.subr.bf16.mxu0 0
      %908 = vmatpush1.bf16.msra.mxu0 0
      %909 = vmatprep.subr.bf16.mxu0 0
      %910 = vmatpush1.bf16.msra.mxu0 0
      %911 = vmatprep.subr.bf16.mxu0 0
      %912 = vmatpush1.bf16.msra.mxu0 0
      %913 = vmatprep.subr.bf16.mxu0 0
      %914 = vmatpush1.bf16.msra.mxu0 0
      %915 = vmatprep.subr.bf16.mxu0 0
      %916 = vmatpush1.bf16.msra.mxu0 0
      %917 = vmatprep.subr.bf16.mxu0 0
      %918 = vmatpush1.bf16.msra.mxu0 0
      %919 = vmatprep.subr.bf16.mxu0 0
      %920 = vmatpush1.bf16.msra.mxu0 0
      %921 = vmatprep.subr.bf16.mxu0 0
      %922 = vmatpush1.bf16.msra.mxu0 0
      %923 = vmatprep.mubr.bf16.mxu0 0
      %924 = vmatmul.mubr.bf16.gmra.mrb[0].mxu0 %v889
      %v925 = vpop.f32.mrb[0].mxu0
      %v926 = vadd.f32 %v874, %v925
      %v927 = vpop.f32.mrb[0].mxu0
      %v928 = vpop.f32.mrb[0].mxu0
      %v929 = vadd.f32 %v874, %v928
      %v930 = vpop.f32.mrb[0].mxu0
      %931 = vdwg.mxu0
      %v932 = vadd.f32 %v640, %v926
      %v933 = vadd.f32 %v641, %v929
      %v934 = vmul.f32 %v932, %v633
      %v935 = vmul.f32 %v933, %v638
      %v936 = vadd.f32 %v926, 0.0
      %v937 = vadd.f32 %v929, 0.0
      %v940 = vrot.slane %v934, 6
      %v941 = vrot.slane %v935, 6
      %v942 = vsel %vm585, %v940, %v941
      %v946 = vsel %vm585, 0.0, %v940
      %v947 = vsel %vm585, %v941, 0.0
      %v950 = vrot.slane %v946, 1
      %v951 = vrot.slane %v942, 1
      %v952 = vsel %vm654, %v950, %v951
      %v953 = vrot.slane %v947, 1
      %v954 = vsel %vm654, %v951, %v953
      %955 = vrot.lane.b32.xlu0 %v952, 32
      %v956 = vpop.permute.xlu0 %955
      %957 = vrot.lane.b32.xlu0 %v954, 32
      %v958 = vpop.permute.xlu0 %957
      %v961 = vrot.slane %v946, 2
      %v962 = vrot.slane %v942, 2
      %v963 = vsel %vm666, %v961, %v962
      %v964 = vrot.slane %v947, 2
      %v965 = vsel %vm666, %v962, %v964
      %966 = vrot.lane.b32.xlu0 %v963, 64
      %v967 = vpop.permute.xlu0 %966
      %968 = vrot.lane.b32.xlu0 %v965, 64
      %v969 = vpop.permute.xlu0 %968
      %v972 = vrot.slane %v946, 3
      %v973 = vrot.slane %v942, 3
      %v974 = vsel %vm678, %v972, %v973
      %v975 = vrot.slane %v947, 3
      %v976 = vsel %vm678, %v973, %v975
      %977 = vrot.lane.b32.xlu0 %v974, 96
      %v978 = vpop.permute.xlu0 %977
      %979 = vrot.lane.b32.xlu0 %v976, 96
      %v980 = vpop.permute.xlu0 %979
      %v983 = vrot.slane %v946, 4
      %v984 = vrot.slane %v942, 4
      %v985 = vsel %vm690, %v983, %v984
      %v986 = vrot.slane %v947, 4
      %v987 = vsel %vm690, %v984, %v986
      %v990 = vsel %vm698, %v946, %v956
      %v991 = vsel %vm698, %v942, %v958
      %v992 = vsel %vm701, %v990, %v967
      %v993 = vsel %vm701, %v991, %v969
      %v994 = vsel %vm704, %v992, %v978
      %v995 = vsel %vm704, %v993, %v980
      %v996 = vpack.c.bf16 %v995, %v994
      %v997 = vpack.c.bf16 %v987, %v985
      %s998 = scalar_lea.vmem %s531, 80
      %v999 = vld [vmem:[%s998] sm:$0xf]
      %v1000 = vld [vmem:[%s998 + $0x4] sm:$0xf]
      %v1001 = vld [vmem:[%s998 + $0x8] sm:$0xf]
      %v1002 = vld [vmem:[%s998 + $0xc] sm:$0xf]
      %v1003 = vld [vmem:[%s998 + $0x10] sm:$0xf]
      %v1004 = vld [vmem:[%s998 + $0x14] sm:$0xf]
      %v1005 = vld [vmem:[%s998 + $0x18] sm:$0xf]
      %v1006 = vld [vmem:[%s998 + $0x1c] sm:$0xf]
      %v1007 = vld [vmem:[%s998 + $0x20] sm:$0xf]
      %v1008 = vld [vmem:[%s998 + $0x24] sm:$0xf]
      %v1009 = vld [vmem:[%s998 + $0x28] sm:$0xf]
      %v1010 = vld [vmem:[%s998 + $0x2c] sm:$0xf]
      %v1011 = vld [vmem:[%s998 + $0x30] sm:$0xf]
      %v1012 = vld [vmem:[%s998 + $0x34] sm:$0xf]
      %v1013 = vld [vmem:[%s998 + $0x38] sm:$0xf]
      %v1014 = vld [vmem:[%s998 + $0x3c] sm:$0xf]
      %v1015 = vld [vmem:[%s998 + $0x40] sm:$0xf]
      %v1016 = vld [vmem:[%s998 + $0x44] sm:$0xf]
      %v1017 = vld [vmem:[%s998 + $0x48] sm:$0xf]
      %v1018 = vld [vmem:[%s998 + $0x4c] sm:$0xf]
      %s1019 = scalar_lea.vmem %s535, 1
      %v1020 = vld [vmem:[%s1019] sm:$0x1]
      %v1022 = vlaneseq
      %v1023 = vshrl.u32 %v1022, 7
      %v1024 = vsub.s32 0, %v1023
      %v1025 = vrot.slane %v1020, %v1024
      %v1047 = vunpack.c.l.b16 %v999
      %v1048 = vunpack.c.l.b16 %v1000
      %v1049 = vunpack.c.l.b16 %v1001
      %v1050 = vunpack.c.l.b16 %v1002
      %v1051 = vunpack.c.l.b16 %v1003
      %v1052 = vunpack.c.l.b16 %v1004
      %v1053 = vunpack.c.l.b16 %v1005
      %v1054 = vunpack.c.l.b16 %v1006
      %v1055 = vunpack.c.l.b16 %v1007
      %v1056 = vunpack.c.l.b16 %v1008
      %v1057 = vunpack.c.l.b16 %v1009
      %v1058 = vunpack.c.l.b16 %v1010
      %v1059 = vunpack.c.l.b16 %v1011
      %v1060 = vunpack.c.l.b16 %v1012
      %v1061 = vunpack.c.l.b16 %v1013
      %v1062 = vunpack.c.l.b16 %v1014
      %v1063 = vunpack.c.l.b16 %v1015
      %v1064 = vunpack.c.l.b16 %v1016
      %v1065 = vunpack.c.l.b16 %v1017
      %v1066 = vunpack.c.l.b16 %v1018
      %v1067 = vpack.c.b16 %v1048, %v1047
      %v1068 = vpack.c.b16 %v1050, %v1049
      %v1069 = vpack.c.b16 %v1052, %v1051
      %v1070 = vpack.c.b16 %v1054, %v1053
      %v1071 = vpack.c.b16 %v1056, %v1055
      %v1072 = vpack.c.b16 %v1058, %v1057
      %v1073 = vpack.c.b16 %v1060, %v1059
      %v1074 = vpack.c.b16 %v1062, %v1061
      %v1075 = vpack.c.b16 %v1064, %v1063
      %v1076 = vpack.c.b16 %v1066, %v1065
      %v1088 = vsel %vm698, %v997, 0
      %1090 = vmatprep.subr.bf16.mxu0 0
      %1091 = vmatpush1.bf16.msra.mxu0 %v1067
      %1092 = vmatprep.subr.bf16.mxu0 0
      %1093 = vmatpush1.bf16.msra.mxu0 %v1068
      %1094 = vmatprep.subr.bf16.mxu0 0
      %1095 = vmatpush1.bf16.msra.mxu0 %v1069
      %1096 = vmatprep.subr.bf16.mxu0 0
      %1097 = vmatpush1.bf16.msra.mxu0 %v1070
      %1098 = vmatprep.subr.bf16.mxu0 0
      %1099 = vmatpush1.bf16.msra.mxu0 %v1071
      %1100 = vmatprep.subr.bf16.mxu0 0
      %1101 = vmatpush1.bf16.msra.mxu0 %v1072
      %1102 = vmatprep.subr.bf16.mxu0 0
      %1103 = vmatpush1.bf16.msra.mxu0 %v1073
      %1104 = vmatprep.subr.bf16.mxu0 0
      %1105 = vmatpush1.bf16.msra.mxu0 %v1074
      %1106 = vmatprep.subr.bf16.mxu0 0
      %1107 = vmatpush1.bf16.msra.mxu0 %v1075
      %1108 = vmatprep.subr.bf16.mxu0 0
      %1109 = vmatpush1.bf16.msra.mxu0 %v1076
      %1110 = vmatprep.subr.bf16.mxu0 0
      %1111 = vmatpush1.bf16.msra.mxu0 0
      %1112 = vmatprep.subr.bf16.mxu0 0
      %1113 = vmatpush1.bf16.msra.mxu0 0
      %1114 = vmatprep.subr.bf16.mxu0 0
      %1115 = vmatpush1.bf16.msra.mxu0 0
      %1116 = vmatprep.subr.bf16.mxu0 0
      %1117 = vmatpush1.bf16.msra.mxu0 0
      %1118 = vmatprep.subr.bf16.mxu0 0
      %1119 = vmatpush1.bf16.msra.mxu0 0
      %1120 = vmatprep.subr.bf16.mxu0 0
      %1121 = vmatpush1.bf16.msra.mxu0 0
      %1122 = vmatprep.mubr.bf16.mxu0 %v1088
      %1123 = vmatmul.mubr.bf16.gmra.mrb[0].mxu0 %v996
      %v1124 = vpop.f32.mrb[0].mxu0
      %v1125 = vadd.f32 %v1025, %v1124
      %v1126 = vpop.f32.mrb[0].mxu0
      %v1127 = vpop.f32.mrb[0].mxu0
      %v1128 = vadd.f32 %v1025, %v1127
      %v1129 = vpop.f32.mrb[0].mxu0
      %1130 = vdwg.mxu0
      %v1131 = vtanh.pop %v1125
      %v1132 = vtanh.pop %v1128
      %v1133 = vsub.f32 0.0, %v1125
      %v1134 = vsub.f32 0.0, %v1128
      %v1135 = vmul.f32 %v1133, 1.442695
      %v1136 = vpow.pop %v1135
      %v1137 = vmul.f32 %v1134, 1.442695
      %v1138 = vpow.pop %v1137
      %v1139 = vadd.f32 %v1136, 1.0
      %v1140 = vadd.f32 %v1138, 1.0
      %v1141 = vrcp.pop %v1139
      %v1142 = vmul.f32 1.0, %v1141
      %v1143 = vrcp.pop %v1140
      %v1144 = vmul.f32 1.0, %v1143
      %1147 = vrot.lane.b32.xlu0 %v1142, 96
      %v1148 = vpop.permute.xlu0 %1147
      %1149 = vrot.lane.b32.xlu0 %v1144, 96
      %v1150 = vpop.permute.xlu0 %1149
      %v1153 = vmul.f32 %v1131, %v1148
      %v1154 = vmul.f32 %v1132, %v1150
      %v1155 = vpack.c.bf16 %v1154, %v1153
      %s1156 = scalar_lea.vmem %s540, 16
      %v1157 = vld [vmem:[%s1156] sm:$0xf]
      %v1158 = vld [vmem:[%s1156 + $0x4] sm:$0xf]
      %v1159 = vld [vmem:[%s1156 + $0x8] sm:$0xf]
      %v1160 = vld [vmem:[%s1156 + $0xc] sm:$0xf]
      %s1161 = scalar_lea.vmem %s544, 1
      %v1162 = vld [vmem:[%s1161] sm:$0x1]
      %v1164 = vlaneseq
      %v1165 = vshrl.u32 %v1164, 7
      %v1166 = vsub.s32 0, %v1165
      %v1167 = vrot.slane %v1162, %v1166
      %v1173 = vunpack.c.l.b16 %v1157
      %v1174 = vunpack.c.l.b16 %v1158
      %v1175 = vunpack.c.l.b16 %v1159
      %v1176 = vunpack.c.l.b16 %v1160
      %v1177 = vpack.c.b16 %v1174, %v1173
      %v1178 = vpack.c.b16 %v1176, %v1175
      %v1182 = vsel %vm698, %v1155, 0
      %1184 = vmatprep.subr.bf16.mxu0 0
      %1185 = vmatpush1.bf16.msra.mxu0 %v1177
      %1186 = vmatprep.subr.bf16.mxu0 0
      %1187 = vmatpush1.bf16.msra.mxu0 %v1178
      %1188 = vmatprep.subr.bf16.mxu0 0
      %1189 = vmatpush1.bf16.msra.mxu0 0
      %1190 = vmatprep.subr.bf16.mxu0 0
      %1191 = vmatpush1.bf16.msra.mxu0 0
      %1192 = vmatprep.subr.bf16.mxu0 0
      %1193 = vmatpush1.bf16.msra.mxu0 0
      %1194 = vmatprep.subr.bf16.mxu0 0
      %1195 = vmatpush1.bf16.msra.mxu0 0
      %1196 = vmatprep.subr.bf16.mxu0 0
      %1197 = vmatpush1.bf16.msra.mxu0 0
      %1198 = vmatprep.subr.bf16.mxu0 0
      %1199 = vmatpush1.bf16.msra.mxu0 0
      %1200 = vmatprep.subr.bf16.mxu0 0
      %1201 = vmatpush1.bf16.msra.mxu0 0
      %1202 = vmatprep.subr.bf16.mxu0 0
      %1203 = vmatpush1.bf16.msra.mxu0 0
      %1204 = vmatprep.subr.bf16.mxu0 0
      %1205 = vmatpush1.bf16.msra.mxu0 0
      %1206 = vmatprep.subr.bf16.mxu0 0
      %1207 = vmatpush1.bf16.msra.mxu0 0
      %1208 = vmatprep.subr.bf16.mxu0 0
      %1209 = vmatpush1.bf16.msra.mxu0 0
      %1210 = vmatprep.subr.bf16.mxu0 0
      %1211 = vmatpush1.bf16.msra.mxu0 0
      %1212 = vmatprep.subr.bf16.mxu0 0
      %1213 = vmatpush1.bf16.msra.mxu0 0
      %1214 = vmatprep.subr.bf16.mxu0 0
      %1215 = vmatpush1.bf16.msra.mxu0 0
      %1216 = vmatprep.mubr.bf16.mxu0 0
      %1217 = vmatmul.mubr.bf16.gmra.mrb[0].mxu0 %v1182
      %v1218 = vpop.f32.mrb[0].mxu0
      %v1219 = vadd.f32 %v1167, %v1218
      %v1220 = vpop.f32.mrb[0].mxu0
      %v1221 = vpop.f32.mrb[0].mxu0
      %v1222 = vadd.f32 %v1167, %v1221
      %v1223 = vpop.f32.mrb[0].mxu0
      %1224 = vdwg.mxu0
      %v1225 = vadd.f32 %v934, %v1219
      %v1226 = vadd.f32 %v935, %v1222
      %v1227 = vmul.f32 %v1225, %v633
      %v1228 = vmul.f32 %v1226, %v638
      %v1229 = vadd.f32 %v936, %v1219
      %v1230 = vadd.f32 %v937, %v1222
      %v1233 = vrot.slane %v1227, 6
      %v1234 = vrot.slane %v1228, 6
      %v1235 = vsel %vm585, %v1233, %v1234
      %v1239 = vsel %vm585, 0.0, %v1233
      %v1240 = vsel %vm585, %v1234, 0.0
      %v1243 = vrot.slane %v1239, 1
      %v1244 = vrot.slane %v1235, 1
      %v1245 = vsel %vm654, %v1243, %v1244
      %v1246 = vrot.slane %v1240, 1
      %v1247 = vsel %vm654, %v1244, %v1246
      %1248 = vrot.lane.b32.xlu0 %v1245, 32
      %v1249 = vpop.permute.xlu0 %1248
      %1250 = vrot.lane.b32.xlu0 %v1247, 32
      %v1251 = vpop.permute.xlu0 %1250
      %v1254 = vrot.slane %v1239, 2
      %v1255 = vrot.slane %v1235, 2
      %v1256 = vsel %vm666, %v1254, %v1255
      %v1257 = vrot.slane %v1240, 2
      %v1258 = vsel %vm666, %v1255, %v1257
      %1259 = vrot.lane.b32.xlu0 %v1256, 64
      %v1260 = vpop.permute.xlu0 %1259
      %1261 = vrot.lane.b32.xlu0 %v1258, 64
      %v1262 = vpop.permute.xlu0 %1261
      %v1265 = vrot.slane %v1239, 3
      %v1266 = vrot.slane %v1235, 3
      %v1267 = vsel %vm678, %v1265, %v1266
      %v1268 = vrot.slane %v1240, 3
      %v1269 = vsel %vm678, %v1266, %v1268
      %1270 = vrot.lane.b32.xlu0 %v1267, 96
      %v1271 = vpop.permute.xlu0 %1270
      %1272 = vrot.lane.b32.xlu0 %v1269, 96
      %v1273 = vpop.permute.xlu0 %1272
      %v1276 = vrot.slane %v1239, 4
      %v1277 = vrot.slane %v1235, 4
      %v1278 = vsel %vm690, %v1276, %v1277
      %v1279 = vrot.slane %v1240, 4
      %v1280 = vsel %vm690, %v1277, %v1279
      %v1283 = vsel %vm698, %v1239, %v1249
      %v1284 = vsel %vm698, %v1235, %v1251
      %v1285 = vsel %vm701, %v1283, %v1260
      %v1286 = vsel %vm701, %v1284, %v1262
      %v1287 = vsel %vm704, %v1285, %v1271
      %v1288 = vsel %vm704, %v1286, %v1273
      %v1289 = vpack.c.bf16 %v1288, %v1287
      %v1290 = vpack.c.bf16 %v1280, %v1278
      %s1291 = scalar_lea.vmem %s531, 160
      %v1292 = vld [vmem:[%s1291] sm:$0xf]
      %v1293 = vld [vmem:[%s1291 + $0x4] sm:$0xf]
      %v1294 = vld [vmem:[%s1291 + $0x8] sm:$0xf]
      %v1295 = vld [vmem:[%s1291 + $0xc] sm:$0xf]
      %v1296 = vld [vmem:[%s1291 + $0x10] sm:$0xf]
      %v1297 = vld [vmem:[%s1291 + $0x14] sm:$0xf]
      %v1298 = vld [vmem:[%s1291 + $0x18] sm:$0xf]
      %v1299 = vld [vmem:[%s1291 + $0x1c] sm:$0xf]
      %v1300 = vld [vmem:[%s1291 + $0x20] sm:$0xf]
      %v1301 = vld [vmem:[%s1291 + $0x24] sm:$0xf]
      %v1302 = vld [vmem:[%s1291 + $0x28] sm:$0xf]
      %v1303 = vld [vmem:[%s1291 + $0x2c] sm:$0xf]
      %v1304 = vld [vmem:[%s1291 + $0x30] sm:$0xf]
      %v1305 = vld [vmem:[%s1291 + $0x34] sm:$0xf]
      %v1306 = vld [vmem:[%s1291 + $0x38] sm:$0xf]
      %v1307 = vld [vmem:[%s1291 + $0x3c] sm:$0xf]
      %v1308 = vld [vmem:[%s1291 + $0x40] sm:$0xf]
      %v1309 = vld [vmem:[%s1291 + $0x44] sm:$0xf]
      %v1310 = vld [vmem:[%s1291 + $0x48] sm:$0xf]
      %v1311 = vld [vmem:[%s1291 + $0x4c] sm:$0xf]
      %s1312 = scalar_lea.vmem %s535, 2
      %v1313 = vld [vmem:[%s1312] sm:$0x1]
      %v1315 = vlaneseq
      %v1316 = vshrl.u32 %v1315, 7
      %v1317 = vsub.s32 0, %v1316
      %v1318 = vrot.slane %v1313, %v1317
      %v1340 = vunpack.c.l.b16 %v1292
      %v1341 = vunpack.c.l.b16 %v1293
      %v1342 = vunpack.c.l.b16 %v1294
      %v1343 = vunpack.c.l.b16 %v1295
      %v1344 = vunpack.c.l.b16 %v1296
      %v1345 = vunpack.c.l.b16 %v1297
      %v1346 = vunpack.c.l.b16 %v1298
      %v1347 = vunpack.c.l.b16 %v1299
      %v1348 = vunpack.c.l.b16 %v1300
      %v1349 = vunpack.c.l.b16 %v1301
      %v1350 = vunpack.c.l.b16 %v1302
      %v1351 = vunpack.c.l.b16 %v1303
      %v1352 = vunpack.c.l.b16 %v1304
      %v1353 = vunpack.c.l.b16 %v1305
      %v1354 = vunpack.c.l.b16 %v1306
      %v1355 = vunpack.c.l.b16 %v1307
      %v1356 = vunpack.c.l.b16 %v1308
      %v1357 = vunpack.c.l.b16 %v1309
      %v1358 = vunpack.c.l.b16 %v1310
      %v1359 = vunpack.c.l.b16 %v1311
      %v1360 = vpack.c.b16 %v1341, %v1340
      %v1361 = vpack.c.b16 %v1343, %v1342
      %v1362 = vpack.c.b16 %v1345, %v1344
      %v1363 = vpack.c.b16 %v1347, %v1346
      %v1364 = vpack.c.b16 %v1349, %v1348
      %v1365 = vpack.c.b16 %v1351, %v1350
      %v1366 = vpack.c.b16 %v1353, %v1352
      %v1367 = vpack.c.b16 %v1355, %v1354
      %v1368 = vpack.c.b16 %v1357, %v1356
      %v1369 = vpack.c.b16 %v1359, %v1358
      %v1381 = vsel %vm698, %v1290, 0
      %1383 = vmatprep.subr.bf16.mxu0 0
      %1384 = vmatpush1.bf16.msra.mxu0 %v1360
      %1385 = vmatprep.subr.bf16.mxu0 0
      %1386 = vmatpush1.bf16.msra.mxu0 %v1361
      %1387 = vmatprep.subr.bf16.mxu0 0
      %1388 = vmatpush1.bf16.msra.mxu0 %v1362
      %1389 = vmatprep.subr.bf16.mxu0 0
      %1390 = vmatpush1.bf16.msra.mxu0 %v1363
      %1391 = vmatprep.subr.bf16.mxu0 0
      %1392 = vmatpush1.bf16.msra.mxu0 %v1364
      %1393 = vmatprep.subr.bf16.mxu0 0
      %1394 = vmatpush1.bf16.msra.mxu0 %v1365
      %1395 = vmatprep.subr.bf16.mxu0 0
      %1396 = vmatpush1.bf16.msra.mxu0 %v1366
      %1397 = vmatprep.subr.bf16.mxu0 0
      %1398 = vmatpush1.bf16.msra.mxu0 %v1367
      %1399 = vmatprep.subr.bf16.mxu0 0
      %1400 = vmatpush1.bf16.msra.mxu0 %v1368
      %1401 = vmatprep.subr.bf16.mxu0 0
      %1402 = vmatpush1.bf16.msra.mxu0 %v1369
      %1403 = vmatprep.subr.bf16.mxu0 0
      %1404 = vmatpush1.bf16.msra.mxu0 0
      %1405 = vmatprep.subr.bf16.mxu0 0
      %1406 = vmatpush1.bf16.msra.mxu0 0
      %1407 = vmatprep.subr.bf16.mxu0 0
      %1408 = vmatpush1.bf16.msra.mxu0 0
      %1409 = vmatprep.subr.bf16.mxu0 0
      %1410 = vmatpush1.bf16.msra.mxu0 0
      %1411 = vmatprep.subr.bf16.mxu0 0
      %1412 = vmatpush1.bf16.msra.mxu0 0
      %1413 = vmatprep.subr.bf16.mxu0 0
      %1414 = vmatpush1.bf16.msra.mxu0 0
      %1415 = vmatprep.mubr.bf16.mxu0 %v1381
      %1416 = vmatmul.mubr.bf16.gmra.mrb[0].mxu0 %v1289
      %v1417 = vpop.f32.mrb[0].mxu0
      %v1418 = vadd.f32 %v1318, %v1417
      %v1419 = vpop.f32.mrb[0].mxu0
      %v1420 = vpop.f32.mrb[0].mxu0
      %v1421 = vadd.f32 %v1318, %v1420
      %v1422 = vpop.f32.mrb[0].mxu0
      %1423 = vdwg.mxu0
      %v1424 = vtanh.pop %v1418
      %v1425 = vtanh.pop %v1421
      %v1426 = vsub.f32 0.0, %v1418
      %v1427 = vsub.f32 0.0, %v1421
      %v1428 = vmul.f32 %v1426, 1.442695
      %v1429 = vpow.pop %v1428
      %v1430 = vmul.f32 %v1427, 1.442695
      %v1431 = vpow.pop %v1430
      %v1432 = vadd.f32 %v1429, 1.0
      %v1433 = vadd.f32 %v1431, 1.0
      %v1434 = vrcp.pop %v1432
      %v1435 = vmul.f32 1.0, %v1434
      %v1436 = vrcp.pop %v1433
      %v1437 = vmul.f32 1.0, %v1436
      %1440 = vrot.lane.b32.xlu0 %v1435, 96
      %v1441 = vpop.permute.xlu0 %1440
      %1442 = vrot.lane.b32.xlu0 %v1437, 96
      %v1443 = vpop.permute.xlu0 %1442
      %v1446 = vmul.f32 %v1424, %v1441
      %v1447 = vmul.f32 %v1425, %v1443
      %v1448 = vpack.c.bf16 %v1447, %v1446
      %s1449 = scalar_lea.vmem %s540, 32
      %v1450 = vld [vmem:[%s1449] sm:$0xf]
      %v1451 = vld [vmem:[%s1449 + $0x4] sm:$0xf]
      %v1452 = vld [vmem:[%s1449 + $0x8] sm:$0xf]
      %v1453 = vld [vmem:[%s1449 + $0xc] sm:$0xf]
      %s1454 = scalar_lea.vmem %s544, 2
      %v1455 = vld [vmem:[%s1454] sm:$0x1]
      %v1457 = vlaneseq
      %v1458 = vshrl.u32 %v1457, 7
      %v1459 = vsub.s32 0, %v1458
      %v1460 = vrot.slane %v1455, %v1459
      %v1466 = vunpack.c.l.b16 %v1450
      %v1467 = vunpack.c.l.b16 %v1451
      %v1468 = vunpack.c.l.b16 %v1452
      %v1469 = vunpack.c.l.b16 %v1453
      %v1470 = vpack.c.b16 %v1467, %v1466
      %v1471 = vpack.c.b16 %v1469, %v1468
      %v1475 = vsel %vm698, %v1448, 0
      %1477 = vmatprep.subr.bf16.mxu0 0
      %1478 = vmatpush1.bf16.msra.mxu0 %v1470
      %1479 = vmatprep.subr.bf16.mxu0 0
      %1480 = vmatpush1.bf16.msra.mxu0 %v1471
      %1481 = vmatprep.subr.bf16.mxu0 0
      %1482 = vmatpush1.bf16.msra.mxu0 0
      %1483 = vmatprep.subr.bf16.mxu0 0
      %1484 = vmatpush1.bf16.msra.mxu0 0
      %1485 = vmatprep.subr.bf16.mxu0 0
      %1486 = vmatpush1.bf16.msra.mxu0 0
      %1487 = vmatprep.subr.bf16.mxu0 0
      %1488 = vmatpush1.bf16.msra.mxu0 0
      %1489 = vmatprep.subr.bf16.mxu0 0
      %1490 = vmatpush1.bf16.msra.mxu0 0
      %1491 = vmatprep.subr.bf16.mxu0 0
      %1492 = vmatpush1.bf16.msra.mxu0 0
      %1493 = vmatprep.subr.bf16.mxu0 0
      %1494 = vmatpush1.bf16.msra.mxu0 0
      %1495 = vmatprep.subr.bf16.mxu0 0
      %1496 = vmatpush1.bf16.msra.mxu0 0
      %1497 = vmatprep.subr.bf16.mxu0 0
      %1498 = vmatpush1.bf16.msra.mxu0 0
      %1499 = vmatprep.subr.bf16.mxu0 0
      %1500 = vmatpush1.bf16.msra.mxu0 0
      %1501 = vmatprep.subr.bf16.mxu0 0
      %1502 = vmatpush1.bf16.msra.mxu0 0
      %1503 = vmatprep.subr.bf16.mxu0 0
      %1504 = vmatpush1.bf16.msra.mxu0 0
      %1505 = vmatprep.subr.bf16.mxu0 0
      %1506 = vmatpush1.bf16.msra.mxu0 0
      %1507 = vmatprep.subr.bf16.mxu0 0
      %1508 = vmatpush1.bf16.msra.mxu0 0
      %1509 = vmatprep.mubr.bf16.mxu0 0
      %1510 = vmatmul.mubr.bf16.gmra.mrb[0].mxu0 %v1475
      %v1511 = vpop.f32.mrb[0].mxu0
      %v1512 = vadd.f32 %v1460, %v1511
      %v1513 = vpop.f32.mrb[0].mxu0
      %v1514 = vpop.f32.mrb[0].mxu0
      %v1515 = vadd.f32 %v1460, %v1514
      %v1516 = vpop.f32.mrb[0].mxu0
      %1517 = vdwg.mxu0
      %v1518 = vadd.f32 %v1227, %v1512
      %v1519 = vadd.f32 %v1228, %v1515
      %v1520 = vmul.f32 %v1518, %v633
      %v1521 = vmul.f32 %v1519, %v638
      %v1522 = vadd.f32 %v1229, %v1512
      %v1523 = vadd.f32 %v1230, %v1515
      %v1526 = vrot.slane %v1520, 6
      %v1527 = vrot.slane %v1521, 6
      %v1528 = vsel %vm585, %v1526, %v1527
      %v1532 = vsel %vm585, 0.0, %v1526
      %v1533 = vsel %vm585, %v1527, 0.0
      %v1536 = vrot.slane %v1532, 1
      %v1537 = vrot.slane %v1528, 1
      %v1538 = vsel %vm654, %v1536, %v1537
      %v1539 = vrot.slane %v1533, 1
      %v1540 = vsel %vm654, %v1537, %v1539
      %1541 = vrot.lane.b32.xlu0 %v1538, 32
      %v1542 = vpop.permute.xlu0 %1541
      %1543 = vrot.lane.b32.xlu0 %v1540, 32
      %v1544 = vpop.permute.xlu0 %1543
      %v1547 = vrot.slane %v1532, 2
      %v1548 = vrot.slane %v1528, 2
      %v1549 = vsel %vm666, %v1547, %v1548
      %v1550 = vrot.slane %v1533, 2
      %v1551 = vsel %vm666, %v1548, %v1550
      %1552 = vrot.lane.b32.xlu0 %v1549, 64
      %v1553 = vpop.permute.xlu0 %1552
      %1554 = vrot.lane.b32.xlu0 %v1551, 64
      %v1555 = vpop.permute.xlu0 %1554
      %v1558 = vrot.slane %v1532, 3
      %v1559 = vrot.slane %v1528, 3
      %v1560 = vsel %vm678, %v1558, %v1559
      %v1561 = vrot.slane %v1533, 3
      %v1562 = vsel %vm678, %v1559, %v1561
      %1563 = vrot.lane.b32.xlu0 %v1560, 96
      %v1564 = vpop.permute.xlu0 %1563
      %1565 = vrot.lane.b32.xlu0 %v1562, 96
      %v1566 = vpop.permute.xlu0 %1565
      %v1569 = vrot.slane %v1532, 4
      %v1570 = vrot.slane %v1528, 4
      %v1571 = vsel %vm690, %v1569, %v1570
      %v1572 = vrot.slane %v1533, 4
      %v1573 = vsel %vm690, %v1570, %v1572
      %v1576 = vsel %vm698, %v1532, %v1542
      %v1577 = vsel %vm698, %v1528, %v1544
      %v1578 = vsel %vm701, %v1576, %v1553
      %v1579 = vsel %vm701, %v1577, %v1555
      %v1580 = vsel %vm704, %v1578, %v1564
      %v1581 = vsel %vm704, %v1579, %v1566
      %v1582 = vpack.c.bf16 %v1581, %v1580
      %v1583 = vpack.c.bf16 %v1573, %v1571
      %s1584 = scalar_lea.vmem %s531, 240
      %v1585 = vld [vmem:[%s1584] sm:$0xf]
      %v1586 = vld [vmem:[%s1584 + $0x4] sm:$0xf]
      %v1587 = vld [vmem:[%s1584 + $0x8] sm:$0xf]
      %v1588 = vld [vmem:[%s1584 + $0xc] sm:$0xf]
      %v1589 = vld [vmem:[%s1584 + $0x10] sm:$0xf]
      %v1590 = vld [vmem:[%s1584 + $0x14] sm:$0xf]
      %v1591 = vld [vmem:[%s1584 + $0x18] sm:$0xf]
      %v1592 = vld [vmem:[%s1584 + $0x1c] sm:$0xf]
      %v1593 = vld [vmem:[%s1584 + $0x20] sm:$0xf]
      %v1594 = vld [vmem:[%s1584 + $0x24] sm:$0xf]
      %v1595 = vld [vmem:[%s1584 + $0x28] sm:$0xf]
      %v1596 = vld [vmem:[%s1584 + $0x2c] sm:$0xf]
      %v1597 = vld [vmem:[%s1584 + $0x30] sm:$0xf]
      %v1598 = vld [vmem:[%s1584 + $0x34] sm:$0xf]
      %v1599 = vld [vmem:[%s1584 + $0x38] sm:$0xf]
      %v1600 = vld [vmem:[%s1584 + $0x3c] sm:$0xf]
      %v1601 = vld [vmem:[%s1584 + $0x40] sm:$0xf]
      %v1602 = vld [vmem:[%s1584 + $0x44] sm:$0xf]
      %v1603 = vld [vmem:[%s1584 + $0x48] sm:$0xf]
      %v1604 = vld [vmem:[%s1584 + $0x4c] sm:$0xf]
      %s1605 = scalar_lea.vmem %s535, 3
      %v1606 = vld [vmem:[%s1605] sm:$0x1]
      %v1608 = vlaneseq
      %v1609 = vshrl.u32 %v1608, 7
      %v1610 = vsub.s32 0, %v1609
      %v1611 = vrot.slane %v1606, %v1610
      %v1633 = vunpack.c.l.b16 %v1585
      %v1634 = vunpack.c.l.b16 %v1586
      %v1635 = vunpack.c.l.b16 %v1587
      %v1636 = vunpack.c.l.b16 %v1588
      %v1637 = vunpack.c.l.b16 %v1589
      %v1638 = vunpack.c.l.b16 %v1590
      %v1639 = vunpack.c.l.b16 %v1591
      %v1640 = vunpack.c.l.b16 %v1592
      %v1641 = vunpack.c.l.b16 %v1593
      %v1642 = vunpack.c.l.b16 %v1594
      %v1643 = vunpack.c.l.b16 %v1595
      %v1644 = vunpack.c.l.b16 %v1596
      %v1645 = vunpack.c.l.b16 %v1597
      %v1646 = vunpack.c.l.b16 %v1598
      %v1647 = vunpack.c.l.b16 %v1599
      %v1648 = vunpack.c.l.b16 %v1600
      %v1649 = vunpack.c.l.b16 %v1601
      %v1650 = vunpack.c.l.b16 %v1602
      %v1651 = vunpack.c.l.b16 %v1603
      %v1652 = vunpack.c.l.b16 %v1604
      %v1653 = vpack.c.b16 %v1634, %v1633
      %v1654 = vpack.c.b16 %v1636, %v1635
      %v1655 = vpack.c.b16 %v1638, %v1637
      %v1656 = vpack.c.b16 %v1640, %v1639
      %v1657 = vpack.c.b16 %v1642, %v1641
      %v1658 = vpack.c.b16 %v1644, %v1643
      %v1659 = vpack.c.b16 %v1646, %v1645
      %v1660 = vpack.c.b16 %v1648, %v1647
      %v1661 = vpack.c.b16 %v1650, %v1649
      %v1662 = vpack.c.b16 %v1652, %v1651
      %v1674 = vsel %vm698, %v1583, 0
      %1676 = vmatprep.subr.bf16.mxu0 0
      %1677 = vmatpush1.bf16.msra.mxu0 %v1653
      %1678 = vmatprep.subr.bf16.mxu0 0
      %1679 = vmatpush1.bf16.msra.mxu0 %v1654
      %1680 = vmatprep.subr.bf16.mxu0 0
      %1681 = vmatpush1.bf16.msra.mxu0 %v1655
      %1682 = vmatprep.subr.bf16.mxu0 0
      %1683 = vmatpush1.bf16.msra.mxu0 %v1656
      %1684 = vmatprep.subr.bf16.mxu0 0
      %1685 = vmatpush1.bf16.msra.mxu0 %v1657
      %1686 = vmatprep.subr.bf16.mxu0 0
      %1687 = vmatpush1.bf16.msra.mxu0 %v1658
      %1688 = vmatprep.subr.bf16.mxu0 0
      %1689 = vmatpush1.bf16.msra.mxu0 %v1659
      %1690 = vmatprep.subr.bf16.mxu0 0
      %1691 = vmatpush1.bf16.msra.mxu0 %v1660
      %1692 = vmatprep.subr.bf16.mxu0 0
      %1693 = vmatpush1.bf16.msra.mxu0 %v1661
      %1694 = vmatprep.subr.bf16.mxu0 0
      %1695 = vmatpush1.bf16.msra.mxu0 %v1662
      %1696 = vmatprep.subr.bf16.mxu0 0
      %1697 = vmatpush1.bf16.msra.mxu0 0
      %1698 = vmatprep.subr.bf16.mxu0 0
      %1699 = vmatpush1.bf16.msra.mxu0 0
      %1700 = vmatprep.subr.bf16.mxu0 0
      %1701 = vmatpush1.bf16.msra.mxu0 0
      %1702 = vmatprep.subr.bf16.mxu0 0
      %1703 = vmatpush1.bf16.msra.mxu0 0
      %1704 = vmatprep.subr.bf16.mxu0 0
      %1705 = vmatpush1.bf16.msra.mxu0 0
      %1706 = vmatprep.subr.bf16.mxu0 0
      %1707 = vmatpush1.bf16.msra.mxu0 0
      %1708 = vmatprep.mubr.bf16.mxu0 %v1674
      %1709 = vmatmul.mubr.bf16.gmra.mrb[0].mxu0 %v1582
      %v1710 = vpop.f32.mrb[0].mxu0
      %v1711 = vadd.f32 %v1611, %v1710
      %v1712 = vpop.f32.mrb[0].mxu0
      %v1713 = vpop.f32.mrb[0].mxu0
      %v1714 = vadd.f32 %v1611, %v1713
      %v1715 = vpop.f32.mrb[0].mxu0
      %1716 = vdwg.mxu0
      %v1717 = vtanh.pop %v1711
      %v1718 = vtanh.pop %v1714
      %v1719 = vsub.f32 0.0, %v1711
      %v1720 = vsub.f32 0.0, %v1714
      %v1721 = vmul.f32 %v1719, 1.442695
      %v1722 = vpow.pop %v1721
      %v1723 = vmul.f32 %v1720, 1.442695
      %v1724 = vpow.pop %v1723
      %v1725 = vadd.f32 %v1722, 1.0
      %v1726 = vadd.f32 %v1724, 1.0
      %v1727 = vrcp.pop %v1725
      %v1728 = vmul.f32 1.0, %v1727
      %v1729 = vrcp.pop %v1726
      %v1730 = vmul.f32 1.0, %v1729
      %1733 = vrot.lane.b32.xlu0 %v1728, 96
      %v1734 = vpop.permute.xlu0 %1733
      %1735 = vrot.lane.b32.xlu0 %v1730, 96
      %v1736 = vpop.permute.xlu0 %1735
      %v1739 = vmul.f32 %v1717, %v1734
      %v1740 = vmul.f32 %v1718, %v1736
      %v1741 = vpack.c.bf16 %v1740, %v1739
      %s1742 = scalar_lea.vmem %s540, 48
      %v1743 = vld [vmem:[%s1742] sm:$0xf]
      %v1744 = vld [vmem:[%s1742 + $0x4] sm:$0xf]
      %v1745 = vld [vmem:[%s1742 + $0x8] sm:$0xf]
      %v1746 = vld [vmem:[%s1742 + $0xc] sm:$0xf]
      %s1747 = scalar_lea.vmem %s544, 3
      %v1748 = vld [vmem:[%s1747] sm:$0x1]
      %v1750 = vlaneseq
      %v1751 = vshrl.u32 %v1750, 7
      %v1752 = vsub.s32 0, %v1751
      %v1753 = vrot.slane %v1748, %v1752
      %v1759 = vunpack.c.l.b16 %v1743
      %v1760 = vunpack.c.l.b16 %v1744
      %v1761 = vunpack.c.l.b16 %v1745
      %v1762 = vunpack.c.l.b16 %v1746
      %v1763 = vpack.c.b16 %v1760, %v1759
      %v1764 = vpack.c.b16 %v1762, %v1761
      %v1768 = vsel %vm698, %v1741, 0
      %1770 = vmatprep.subr.bf16.mxu0 0
      %1771 = vmatpush1.bf16.msra.mxu0 %v1763
      %1772 = vmatprep.subr.bf16.mxu0 0
      %1773 = vmatpush1.bf16.msra.mxu0 %v1764
      %1774 = vmatprep.subr.bf16.mxu0 0
      %1775 = vmatpush1.bf16.msra.mxu0 0
      %1776 = vmatprep.subr.bf16.mxu0 0
      %1777 = vmatpush1.bf16.msra.mxu0 0
      %1778 = vmatprep.subr.bf16.mxu0 0
      %1779 = vmatpush1.bf16.msra.mxu0 0
      %1780 = vmatprep.subr.bf16.mxu0 0
      %1781 = vmatpush1.bf16.msra.mxu0 0
      %1782 = vmatprep.subr.bf16.mxu0 0
      %1783 = vmatpush1.bf16.msra.mxu0 0
      %1784 = vmatprep.subr.bf16.mxu0 0
      %1785 = vmatpush1.bf16.msra.mxu0 0
      %1786 = vmatprep.subr.bf16.mxu0 0
      %1787 = vmatpush1.bf16.msra.mxu0 0
      %1788 = vmatprep.subr.bf16.mxu0 0
      %1789 = vmatpush1.bf16.msra.mxu0 0
      %1790 = vmatprep.subr.bf16.mxu0 0
      %1791 = vmatpush1.bf16.msra.mxu0 0
      %1792 = vmatprep.subr.bf16.mxu0 0
      %1793 = vmatpush1.bf16.msra.mxu0 0
      %1794 = vmatprep.subr.bf16.mxu0 0
      %1795 = vmatpush1.bf16.msra.mxu0 0
      %1796 = vmatprep.subr.bf16.mxu0 0
      %1797 = vmatpush1.bf16.msra.mxu0 0
      %1798 = vmatprep.subr.bf16.mxu0 0
      %1799 = vmatpush1.bf16.msra.mxu0 0
      %1800 = vmatprep.subr.bf16.mxu0 0
      %1801 = vmatpush1.bf16.msra.mxu0 0
      %1802 = vmatprep.mubr.bf16.mxu0 0
      %1803 = vmatmul.mubr.bf16.gmra.mrb[0].mxu0 %v1768
      %v1804 = vpop.f32.mrb[0].mxu0
      %v1805 = vadd.f32 %v1753, %v1804
      %v1806 = vpop.f32.mrb[0].mxu0
      %v1807 = vpop.f32.mrb[0].mxu0
      %v1808 = vadd.f32 %v1753, %v1807
      %v1809 = vpop.f32.mrb[0].mxu0
      %1810 = vdwg.mxu0
      %v1811 = vadd.f32 %v1522, %v1805
      %v1812 = vadd.f32 %v1523, %v1808
      %v1813 = vmul.f32 %v1811, %v633
      %v1814 = vmul.f32 %v1812, %v638
      %v1815 = vpack.c.bf16 %v1814, %v1813
      %v1816 = vld [vmem:[%s549] sm:$0xf]
      %v1817 = vld [vmem:[%s549 + $0x4] sm:$0xf]
      %v1818 = vld [vmem:[%s549 + $0x8] sm:$0xf]
      %v1819 = vld [vmem:[%s549 + $0xc] sm:$0xf]
      %v1820 = vld [vmem:[%s552] sm:$0x1]
      %v1822 = vlaneseq
      %v1823 = vshrl.u32 %v1822, 7
      %v1824 = vsub.s32 0, %v1823
      %v1825 = vrot.slane %v1820, %v1824
      %1828 = vrot.lane.b32.xlu0 %v1815, 96
      %v1829 = vpop.permute.xlu0 %1828
      %v1834 = vunpack.c.l.b16 %v1816
      %v1835 = vunpack.c.l.b16 %v1817
      %v1836 = vunpack.c.l.b16 %v1818
      %v1837 = vunpack.c.l.b16 %v1819
      %v1838 = vpack.c.b16 %v1835, %v1834
      %v1839 = vpack.c.b16 %v1837, %v1836
      %v1843 = vsel %vm698, %v1829, 0
      %1845 = vmatprep.subr.bf16.mxu0 0
      %1846 = vmatpush1.bf16.msra.mxu0 %v1838
      %1847 = vmatprep.subr.bf16.mxu0 0
      %1848 = vmatpush1.bf16.msra.mxu0 %v1839
      %1849 = vmatprep.subr.bf16.mxu0 0
      %1850 = vmatpush1.bf16.msra.mxu0 0
      %1851 = vmatprep.subr.bf16.mxu0 0
      %1852 = vmatpush1.bf16.msra.mxu0 0
      %1853 = vmatprep.subr.bf16.mxu0 0
      %1854 = vmatpush1.bf16.msra.mxu0 0
      %1855 = vmatprep.subr.bf16.mxu0 0
      %1856 = vmatpush1.bf16.msra.mxu0 0
      %1857 = vmatprep.subr.bf16.mxu0 0
      %1858 = vmatpush1.bf16.msra.mxu0 0
      %1859 = vmatprep.subr.bf16.mxu0 0
      %1860 = vmatpush1.bf16.msra.mxu0 0
      %1861 = vmatprep.subr.bf16.mxu0 0
      %1862 = vmatpush1.bf16.msra.mxu0 0
      %1863 = vmatprep.subr.bf16.mxu0 0
      %1864 = vmatpush1.bf16.msra.mxu0 0
      %1865 = vmatprep.subr.bf16.mxu0 0
      %1866 = vmatpush1.bf16.msra.mxu0 0
      %1867 = vmatprep.subr.bf16.mxu0 0
      %1868 = vmatpush1.bf16.msra.mxu0 0
      %1869 = vmatprep.subr.bf16.mxu0 0
      %1870 = vmatpush1.bf16.msra.mxu0 0
      %1871 = vmatprep.subr.bf16.mxu0 0
      %1872 = vmatpush1.bf16.msra.mxu0 0
      %1873 = vmatprep.subr.bf16.mxu0 0
      %1874 = vmatpush1.bf16.msra.mxu0 0
      %1875 = vmatprep.subr.bf16.mxu0 0
      %1876 = vmatpush1.bf16.msra.mxu0 0
      %1877 = vmatprep.mubr.bf16.mxu0 0
      %1878 = vmatmul.mubr.bf16.gmra.mrb[0].mxu0 %v1843
      %v1879 = vpop.f32.mrb[0].mxu0
      %v1880 = vadd.f32 %v1825, %v1879
      %v1881 = vpop.f32.mrb[0].mxu0
      %v1882 = vpop.f32.mrb[0].mxu0
      %v1883 = vadd.f32 %v1825, %v1882
      %v1884 = vpop.f32.mrb[0].mxu0
      %1885 = vdwg.mxu0
      %v1886 = vmul.f32 %v1880, %v633
      %v1887 = vmul.f32 %v1883, %v638
      %v1888 = vmul.f32 %v568, %v633
      %v1889 = vmul.f32 %v569, %v638
      %1892 = vrot.lane.b32.xlu0 %v1888, 124
      %v1893 = vpop.permute.xlu0 %1892
      %1894 = vrot.lane.b32.xlu0 %v1889, 124
      %v1895 = vpop.permute.xlu0 %1894
      %v1898 = vadd.f32 %v1886, %v1893
      %v1899 = vadd.f32 %v1887, %v1895
      %1902 = vrot.lane.b32.xlu0 %v1898, 4
      %v1903 = vpop.permute.xlu0 %1902
      %1904 = vrot.lane.b32.xlu0 %v1899, 4
      %v1905 = vpop.permute.xlu0 %1904
      %v1908 = vsel %vm581, %v568, %v1903
      %v1909 = vsel %vm581, %v569, %v1905
      %v1910 = vld [vmem:[%s2] sm:$0xff]
      %vm1911 = vcmask 64512
      %v1913 = vsel %vm1911, %v1908, 0
      %v1916 = vsel %vm1911, %v1909, 0
      %1918 = vmatprep.subr.mxu0 0.0
      %1919 = vmatpush1.msra.mxu0 %v1910
      %1920 = vmatprep.subr.mxu0 0.0
      %1921 = vmatpush1.msra.mxu0 0.0
      %1922 = vmatprep.subr.mxu0 0.0
      %1923 = vmatpush1.msra.mxu0 0.0
      %1924 = vmatprep.subr.mxu0 0.0
      %1925 = vmatpush1.msra.mxu0 0.0
      %1926 = vmatprep.subr.mxu0 0.0
      %1927 = vmatpush1.msra.mxu0 0.0
      %1928 = vmatprep.subr.mxu0 0.0
      %1929 = vmatpush1.msra.mxu0 0.0
      %1930 = vmatprep.subr.mxu0 0.0
      %1931 = vmatpush1.msra.mxu0 0.0
      %1932 = vmatprep.subr.mxu0 0.0
      %1933 = vmatpush1.msra.mxu0 0.0
      %1934 = vmatprep.subr.mxu0 0.0
      %1935 = vmatpush1.msra.mxu0 0.0
      %1936 = vmatprep.subr.mxu0 0.0
      %1937 = vmatpush1.msra.mxu0 0.0
      %1938 = vmatprep.subr.mxu0 0.0
      %1939 = vmatpush1.msra.mxu0 0.0
      %1940 = vmatprep.subr.mxu0 0.0
      %1941 = vmatpush1.msra.mxu0 0.0
      %1942 = vmatprep.subr.mxu0 0.0
      %1943 = vmatpush1.msra.mxu0 0.0
      %1944 = vmatprep.subr.mxu0 0.0
      %1945 = vmatpush1.msra.mxu0 0.0
      %1946 = vmatprep.subr.mxu0 0.0
      %1947 = vmatpush1.msra.mxu0 0.0
      %1948 = vmatprep.subr.mxu0 0.0
      %1949 = vmatpush1.msra.mxu0 0.0
      %1950 = vmatprep.subr.mxu0 0.0
      %1951 = vmatpush1.msra.mxu0 0.0
      %1952 = vmatprep.subr.mxu0 0.0
      %1953 = vmatpush1.msra.mxu0 0.0
      %1954 = vmatprep.subr.mxu0 0.0
      %1955 = vmatpush1.msra.mxu0 0.0
      %1956 = vmatprep.subr.mxu0 0.0
      %1957 = vmatpush1.msra.mxu0 0.0
      %1958 = vmatprep.subr.mxu0 0.0
      %1959 = vmatpush1.msra.mxu0 0.0
      %1960 = vmatprep.subr.mxu0 0.0
      %1961 = vmatpush1.msra.mxu0 0.0
      %1962 = vmatprep.subr.mxu0 0.0
      %1963 = vmatpush1.msra.mxu0 0.0
      %1964 = vmatprep.subr.mxu0 0.0
      %1965 = vmatpush1.msra.mxu0 0.0
      %1966 = vmatprep.subr.mxu0 0.0
      %1967 = vmatpush1.msra.mxu0 0.0
      %1968 = vmatprep.subr.mxu0 0.0
      %1969 = vmatpush1.msra.mxu0 0.0
      %1970 = vmatprep.subr.mxu0 0.0
      %1971 = vmatpush1.msra.mxu0 0.0
      %1972 = vmatprep.subr.mxu0 0.0
      %1973 = vmatpush1.msra.mxu0 0.0
      %1974 = vmatprep.subr.mxu0 0.0
      %1975 = vmatpush1.msra.mxu0 0.0
      %1976 = vmatprep.subr.mxu0 0.0
      %1977 = vmatpush1.msra.mxu0 0.0
      %1978 = vmatprep.subr.mxu0 0.0
      %1979 = vmatpush1.msra.mxu0 0.0
      %1980 = vmatprep.subr.mxu0 0.0
      %1981 = vmatpush1.msra.mxu0 0.0
      %1982 = vmatprep.mubr.f32.mxu0 0.0
      %1983 = vmatmul.mubr.f32.gmra.mrb[0].mxu0 %v1913
      %v1984 = vpop.f32.mrb[0].mxu0
      %v1985 = vadd.f32 0.0, %v1984
      %v1986 = vpop.f32.mrb[0].mxu0
      %1987 = vmatprep.mubr.f32.mxu0 0.0
      %1988 = vmatmul.mubr.f32.gmra.mrb[0].mxu0 %v1916
      %v1989 = vpop.f32.mrb[0].mxu0
      %v1990 = vadd.f32 0.0, %v1989
      %v1991 = vpop.f32.mrb[0].mxu0
      %1992 = vdwg.mxu0
      %1993 = vst.msk [vmem:[%s557] sm:$0xff] %vm1911, %v1985
      %1994 = vst.msk [vmem:[%s557 + $0x8] sm:$0xff] %vm1911, %v1990
      %p1995 = scmp.lt.s32.totalorder %s26, 1
      %s1996 = scalar_select %p1995, %s26, 1
      %s1997 = smul.addr %s1996, 2
      %s1998 = smul.addr %s1997, 8
      %s1999 = scalar_lea.vmem %s11, %s1998
      // Predicated region
      $region69: #{tpu_custom_call.1} parent=63 // pred_check
        %p2000 = pneg %p333
      $region70: #{tpu_custom_call.1} parent=63 // pred_check_branch
        %2002 = sbr.rel (%p2000) target = $region72
      $region71: #{tpu_custom_call.1} parent=63 // pred_region
        _
      $region72: #{tpu_custom_call.1} parent=63 // pred_fallthru
        _
    $region64: #{tpu_custom_call.1} parent=5 // pred_fallthru
      _
    %p2003 = scmp.le.s32.totalorder 2, %s17
    // Predicated region
    $region73: #{tpu_custom_call.1} parent=5 // pred_check
      %p2004 = pneg %p2003
    $region74: #{tpu_custom_call.1} parent=5 // pred_check_branch
      %2006 = sbr.rel (%p2004) target = $region76
    $region75: #{tpu_custom_call.1} parent=5 // pred_region
      %s2007 = ssub.s32 %s17, 2
      // Predicated region
      $region77: #{tpu_custom_call.1} parent=75 // pred_check
        %p2008 = pneg %p339
      $region78: #{tpu_custom_call.1} parent=75 // pred_check_branch
        %2010 = sbr.rel (%p2008) target = $region80
      $region79: #{tpu_custom_call.1} parent=75 // pred_region
        %p2011 = scmp.lt.s32.totalorder %s28, 1
        %s2012 = scalar_select %p2011, %s28, 1
        %s2013 = smul.addr %s2012, 2
        %s2014 = smul.addr %s2013, 8
        %s2015 = scalar_lea.vmem %s11, %s2014
      $region80: #{tpu_custom_call.1} parent=75 // pred_fallthru
        _
    $region76: #{tpu_custom_call.1} parent=5 // pred_fallthru
      _
  $region6: #{tpu_custom_call.1} parent=0 // loop_footer
    %s21 = sadd.s32 1, %s17
  $region7: #{tpu_custom_call.1} parent=0 // loop_footer_branch
    %16 = sbr.rel target = $region3
  $region8: #{tpu_custom_call.1} parent=0 // loop_exit
    _

</llo_original>
